<compile_context>
chip_gen: v7x
topology: tpu7x:2x2x1
jax: 0.10.0
libtpu: 0.0.40
codegen_flags: <defaults>
</compile_context>

<pallas_src>
import functools

import jax
import jax.numpy as jnp
import numpy as np
from jax.experimental import pallas as pl
from jax.experimental.pallas import tpu as pltpu

EPS = 1e-5                     # torch.nn.LayerNorm default eps
_INV_SQRT2 = 0.7071067811865476
_HIGHEST = jax.lax.Precision.HIGHEST


def _erf(x):
    # Abramowitz & Stegun 7.1.26 (|abs err| < 1.5e-7).  PyTorch's F.gelu
    # default is the exact erf GELU; exp -> EUP, reciprocal -> EUP (approx).
    a1, a2, a3, a4, a5 = (0.254829592, -0.284496736, 1.421413741,
                          -1.453152027, 1.061405429)
    p = 0.3275911
    s = jnp.where(x >= 0.0, 1.0, -1.0)
    z = jnp.abs(x)
    t = pl.reciprocal(1.0 + p * z, approx=True)
    poly = ((((a5 * t + a4) * t + a3) * t + a2) * t + a1) * t
    return s * (1.0 - poly * jnp.exp(-z * z))


def _gelu(x):
    return 0.5 * x * (1.0 + _erf(x * _INV_SQRT2))


def _shift_flat(x, s):
    """result[:, p] = x[:, (p + s) % n] for a static flat offset s (any sign).

    Lane rotation (XLU).  Each row of x is one image-channel's flattened H*W,
    so the rotation never mixes rows; wrapped positions inside a row are
    zeroed by the caller's boundary mask.
    """
    n = x.shape[-1]
    k = (-s) % n
    if k == 0:
        return x
    return pltpu.roll(x, shift=k, axis=x.ndim - 1)


def _hsum_bcast(v, H, W):
    """Sum over the H rows of each flattened H*W lane row (stride-W positions),
    already broadcast back to every h position.  log2(H) roll-and-add tree
    when H is a power of two; H-1 single rolls otherwise."""
    axis = v.ndim - 1
    acc = v
    if H & (H - 1) == 0:
        span = 1
        while span < H:
            acc = acc + pltpu.roll(acc, shift=span * W, axis=axis)
            span *= 2
        return acc
    cur = v
    for _ in range(H - 1):
        cur = pltpu.roll(cur, shift=W, axis=axis)
        acc = acc + cur
    return acc


def _ln_gelu(v, g_ref, b_ref, H, W):
    """LayerNorm over n_feats (the h axis of the flat h*W + w layout) with
    affine params, followed by exact-erf GELU.  All statistics in f32."""
    inv_h = 1.0 / H
    mean = _hsum_bcast(v, H, W) * inv_h
    d = v - mean
    var = _hsum_bcast(d * d, H, W) * inv_h
    xhat = d * jax.lax.rsqrt(var + EPS)
    return _gelu(xhat * g_ref[...] + b_ref[...])


def _conv_flat(t, w_ref, bias_ref, mask_ref, shifts, NB, C):
    """'Same' KxK conv as a single stacked-tap bf16 MXU matmul per image.

    t: (NB*C, H*W) f32, rows are image-major then channel.
    w_ref: (C_out, K*K*C) bf16, tap-major then input channel.
    mask_ref: (K*K, 1, H*W) f32 zero-padding masks.
    shifts: static flat offsets (dy - P)*W + (dx - P), one per tap.
    """
    # Shift + mask once per tap (shared across the NB images in the block).
    taps = []
    for idx, s in enumerate(shifts):
        shifted = _shift_flat(t, s)
        if s != 0:                       # center tap: mask is all ones, skip
            shifted = shifted * mask_ref[idx]
        taps.append(shifted)
    w = w_ref[...]                       # (C_out, K*K*C) bf16
    bias = bias_ref[...]                 # (C_out, 1) f32
    outs = []
    for n in range(NB):
        stack = jnp.concatenate(
            [tap[n * C:(n + 1) * C, :] for tap in taps], axis=0)
        y = jnp.dot(w, stack.astype(jnp.bfloat16),     # bf16 single-pass MXU
                    preferred_element_type=jnp.float32)
        outs.append(y + bias)
    return jnp.concatenate(outs, axis=0)               # (NB*C_out, H*W) f32


def _residual_cnn_kernel(x_ref, g1_ref, b1_ref, g2_ref, b2_ref,
                         w1_ref, c1b_ref, w2_ref, c2b_ref, mask_ref,
                         out_ref, *, H, W, NB, C, shifts):
    """NB batch elements: LN1 -> GELU -> conv1 -> LN2 -> GELU -> conv2 -> +x."""
    x = x_ref[...]                                     # (NB*C, H*W) f32
    t = _ln_gelu(x, g1_ref, b1_ref, H, W)
    c1 = _conv_flat(t, w1_ref, c1b_ref, mask_ref, shifts, NB, C)
    t2 = _ln_gelu(c1, g2_ref, b2_ref, H, W)
    c2 = _conv_flat(t2, w2_ref, c2b_ref, mask_ref, shifts, NB, C)
    out_ref[...] = c2 + x                              # residual


def _pick_nb(N, C, HW, vmem_bytes):
    """Batch elements per grid step: fill the 8 sublanes (NB*C % 8 == 0 or the
    whole batch) while keeping ~24 live activation-sized arrays within a
    conservative fraction of VMEM (leaves room for double buffering)."""
    per_image = C * HW * 4
    cap = max(1, (vmem_bytes // 4) // (24 * per_image))
    legal = [d for d in range(1, N + 1)
             if N % d == 0 and ((d * C) % 8 == 0 or d == N)]
    fitting = [d for d in legal if d <= cap]
    return fitting[-1] if fitting else legal[0]


def residual_cnn_forward(x, g1, b1, g2, b2, w1, c1b, w2, c2b):
    """x: (N, C, H, W) f32.  w1/w2: (C, C, K, K).  g*/b*: (H,).  c*b: (C,)."""
    N, C, H, W = x.shape
    Co, Ci, K, K2 = w1.shape
    assert Co == C and Ci == C and K == K2 and K % 2 == 1
    P = K // 2
    HW = H * W

    try:
        vmem_bytes = int(pltpu.get_tpu_info().vmem_capacity_bytes)
    except Exception:                     # no query available -> v7x worst case
        vmem_bytes = 64 << 20
    NB = _pick_nb(N, C, HW, vmem_bytes)
    rows = NB * C

    # ---- host-side layout plumbing (free reshapes / tiny constants) --------
    x_flat = x.reshape(N * C, HW)         # lane-dense: last dim H*W (mult 128)

    def flat_feats(v):                    # per-h LN affine -> flat (1, HW)
        return jnp.repeat(v.astype(jnp.float32), W)[None, :]

    def flat_w(w):                        # (Co,Ci,K,K) -> (Co, K*K*Ci) bf16
        return (jnp.transpose(w, (0, 2, 3, 1))
                .reshape(Co, K * K * Ci).astype(jnp.bfloat16))

    hh = np.arange(HW) // W
    ww = np.arange(HW) % W
    shifts, masks = [], []
    for dy in range(K):
        for dx in range(K):
            shifts.append((dy - P) * W + (dx - P))
            valid = ((hh + dy - P >= 0) & (hh + dy - P < H) &
                     (ww + dx - P >= 0) & (ww + dx - P < W))
            masks.append(valid.astype(np.float32))
    tap_mask = jnp.asarray(np.stack(masks, axis=0))[:, None, :]  # (K*K, 1, HW)

    kernel = functools.partial(_residual_cnn_kernel, H=H, W=W, NB=NB, C=C,
                               shifts=tuple(shifts))

    def const_spec(shape):
        return pl.BlockSpec(shape, lambda b: (0,) * len(shape))

    out_flat = pl.pallas_call(
        kernel,
        out_shape=jax.ShapeDtypeStruct((N * C, HW), jnp.float32),
        grid=(N // NB,),
        in_specs=[
            pl.BlockSpec((rows, HW), lambda b: (b, 0)),            # x
            const_spec((1, HW)), const_spec((1, HW)),              # g1, b1
            const_spec((1, HW)), const_spec((1, HW)),              # g2, b2
            const_spec((Co, K * K * Ci)), const_spec((Co, 1)),     # w1, c1b
            const_spec((Co, K * K * Ci)), const_spec((Co, 1)),     # w2, c2b
            const_spec((K * K, 1, HW)),                            # tap masks
        ],
        out_specs=pl.BlockSpec((rows, HW), lambda b: (b, 0)),
        compiler_params=pltpu.CompilerParams(
            dimension_semantics=("parallel",)),   # batch blocks across TCs
    )(x_flat, flat_feats(g1), flat_feats(b1), flat_feats(g2), flat_feats(b2),
      flat_w(w1), c1b.reshape(Co, 1).astype(jnp.float32),
      flat_w(w2), c2b.reshape(Co, 1).astype(jnp.float32),
      tap_mask)
    return out_flat.reshape(N, C, H, W)


def _reference_forward(x, g1, b1, g2, b2, w1, c1b, w2, c2b):
    """Pure-JAX reference matching the PyTorch forward (dropout = identity)."""
    def ln_feats(t, g, b):
        m = t.mean(axis=2, keepdims=True)
        v = ((t - m) ** 2).mean(axis=2, keepdims=True)
        return ((t - m) / jnp.sqrt(v + EPS) * g[None, None, :, None]
                + b[None, None, :, None])

    def conv(t, w, b):
        P = w.shape[-1] // 2
        y = jax.lax.conv_general_dilated(
            t, w, window_strides=(1, 1), padding=((P, P), (P, P)),
            dimension_numbers=("NCHW", "OIHW", "NCHW"), precision=_HIGHEST)
        return y + b[None, :, None, None]

    res = x
    t = jax.nn.gelu(ln_feats(x, g1, b1), approximate=False)
    t = conv(t, w1, c1b)
    t = jax.nn.gelu(ln_feats(t, g2, b2), approximate=False)
    t = conv(t, w2, c2b)
    return t + res


if __name__ == "__main__":
    key = jax.random.PRNGKey(0)
    (kx, kw1, kb1, kw2, kb2, kg1, kgb1, kg2, kgb2) = jax.random.split(key, 9)

    # batch=2, in=out channels=4, n_feats=16, time=16, kernel=3, stride=1
    N, C, H, W, K = 2, 4, 16, 16, 3
    x = jax.random.normal(kx, (N, C, H, W), jnp.float32)

    w1 = 0.1 * jax.random.normal(kw1, (C, C, K, K), jnp.float32)
    c1b = 0.1 * jax.random.normal(kb1, (C,), jnp.float32)
    w2 = 0.1 * jax.random.normal(kw2, (C, C, K, K), jnp.float32)
    c2b = 0.1 * jax.random.normal(kb2, (C,), jnp.float32)
    # LayerNorm affine params (fresh module is ones/zeros; perturb slightly so
    # both the scale and shift paths are exercised).
    g1 = 1.0 + 0.05 * jax.random.normal(kg1, (H,), jnp.float32)
    b1 = 0.05 * jax.random.normal(kgb1, (H,), jnp.float32)
    g2 = 1.0 + 0.05 * jax.random.normal(kg2, (H,), jnp.float32)
    b2 = 0.05 * jax.random.normal(kgb2, (H,), jnp.float32)

    out = residual_cnn_forward(x, g1, b1, g2, b2, w1, c1b, w2, c2b)
    out = jax.block_until_ready(out)

    ref = _reference_forward(x, g1, b1, g2, b2, w1, c1b, w2, c2b)
    # The kernel uses bf16 single-pass MXU conv operands (per the perf review)
    # against an f32 Precision.HIGHEST reference: O(1e-3) deviations through
    # the conv -> LN -> conv chain are expected, so compare at 1e-2.
    np.testing.assert_allclose(np.asarray(out), np.asarray(ref),
                               rtol=1e-2, atol=1e-2)
    print("KERNEL_OK")
</pallas_src>

<mosaic_0001>
module attributes {stable_mosaic.version = 11 : i64} {
  func.func @_residual_cnn_kernel(%arg0: i32, %arg1: memref<8x256xf32, #tpu.memory_space<vmem>>, %arg2: memref<1x256xf32, #tpu.memory_space<vmem>>, %arg3: memref<1x256xf32, #tpu.memory_space<vmem>>, %arg4: memref<1x256xf32, #tpu.memory_space<vmem>>, %arg5: memref<1x256xf32, #tpu.memory_space<vmem>>, %arg6: memref<4x36xbf16, #tpu.memory_space<vmem>>, %arg7: memref<4x1xf32, #tpu.memory_space<vmem>>, %arg8: memref<4x36xbf16, #tpu.memory_space<vmem>>, %arg9: memref<4x1xf32, #tpu.memory_space<vmem>>, %arg10: memref<9x1x256xf32, #tpu.memory_space<vmem>>, %arg11: memref<8x256xf32, #tpu.memory_space<vmem>>) attributes {dimension_semantics = [#tpu.dimension_semantics<parallel>], iteration_bounds = array<i64: 1>, scalar_prefetch = 0 : i64, scratch_operands = 0 : i64, tpu.core_type = #tpu.core_type<tc>, window_params = [{transform_indices = @transform_0, window_bounds = array<i64: 8, 256>}, {pipeline_mode = #tpu.pipeline_mode<synchronous>, transform_indices = @transform_1, window_bounds = array<i64: 1, 256>}, {pipeline_mode = #tpu.pipeline_mode<synchronous>, transform_indices = @transform_2, window_bounds = array<i64: 1, 256>}, {pipeline_mode = #tpu.pipeline_mode<synchronous>, transform_indices = @transform_3, window_bounds = array<i64: 1, 256>}, {pipeline_mode = #tpu.pipeline_mode<synchronous>, transform_indices = @transform_4, window_bounds = array<i64: 1, 256>}, {pipeline_mode = #tpu.pipeline_mode<synchronous>, transform_indices = @transform_5, window_bounds = array<i64: 4, 36>}, {pipeline_mode = #tpu.pipeline_mode<synchronous>, transform_indices = @transform_6, window_bounds = array<i64: 4, 1>}, {pipeline_mode = #tpu.pipeline_mode<synchronous>, transform_indices = @transform_7, window_bounds = array<i64: 4, 36>}, {pipeline_mode = #tpu.pipeline_mode<synchronous>, transform_indices = @transform_8, window_bounds = array<i64: 4, 1>}, {pipeline_mode = #tpu.pipeline_mode<synchronous>, transform_indices = @transform_9, window_bounds = array<i64: 9, 1, 256>}, {transform_indices = @transform_10, window_bounds = array<i64: 8, 256>}]} {
    %c0 = arith.constant 0 : index
    %c0_0 = arith.constant 0 : index
    %0 = vector.load %arg1[%c0, %c0_0] : memref<8x256xf32, #tpu.memory_space<vmem>>, vector<8x256xf32>
    %c16_i32 = arith.constant 16 : i32
    %1 = tpu.dynamic_rotate %0 by %c16_i32 dim 1 : vector<8x256xf32>, i32 -> vector<8x256xf32>
    %2 = arith.addf %0, %1 : vector<8x256xf32>
    %c32_i32 = arith.constant 32 : i32
    %3 = tpu.dynamic_rotate %2 by %c32_i32 dim 1 : vector<8x256xf32>, i32 -> vector<8x256xf32>
    %4 = arith.addf %2, %3 : vector<8x256xf32>
    %c64_i32 = arith.constant 64 : i32
    %5 = tpu.dynamic_rotate %4 by %c64_i32 dim 1 : vector<8x256xf32>, i32 -> vector<8x256xf32>
    %6 = arith.addf %4, %5 : vector<8x256xf32>
    %c128_i32 = arith.constant 128 : i32
    %7 = tpu.dynamic_rotate %6 by %c128_i32 dim 1 : vector<8x256xf32>, i32 -> vector<8x256xf32>
    %8 = arith.addf %6, %7 : vector<8x256xf32>
    %cst = arith.constant 6.250000e-02 : f32
    %9 = vector.broadcast %cst : f32 to vector<8x256xf32>
    %10 = arith.mulf %8, %9 : vector<8x256xf32>
    %11 = arith.subf %0, %10 : vector<8x256xf32>
    %12 = arith.mulf %11, %11 : vector<8x256xf32>
    %c16_i32_1 = arith.constant 16 : i32
    %13 = tpu.dynamic_rotate %12 by %c16_i32_1 dim 1 : vector<8x256xf32>, i32 -> vector<8x256xf32>
    %14 = arith.addf %12, %13 : vector<8x256xf32>
    %c32_i32_2 = arith.constant 32 : i32
    %15 = tpu.dynamic_rotate %14 by %c32_i32_2 dim 1 : vector<8x256xf32>, i32 -> vector<8x256xf32>
    %16 = arith.addf %14, %15 : vector<8x256xf32>
    %c64_i32_3 = arith.constant 64 : i32
    %17 = tpu.dynamic_rotate %16 by %c64_i32_3 dim 1 : vector<8x256xf32>, i32 -> vector<8x256xf32>
    %18 = arith.addf %16, %17 : vector<8x256xf32>
    %c128_i32_4 = arith.constant 128 : i32
    %19 = tpu.dynamic_rotate %18 by %c128_i32_4 dim 1 : vector<8x256xf32>, i32 -> vector<8x256xf32>
    %20 = arith.addf %18, %19 : vector<8x256xf32>
    %cst_5 = arith.constant 6.250000e-02 : f32
    %21 = vector.broadcast %cst_5 : f32 to vector<8x256xf32>
    %22 = arith.mulf %20, %21 : vector<8x256xf32>
    %cst_6 = arith.constant 9.99999974E-6 : f32
    %23 = vector.broadcast %cst_6 : f32 to vector<8x256xf32>
    %24 = arith.addf %22, %23 : vector<8x256xf32>
    %25 = math.rsqrt %24 : vector<8x256xf32>
    %26 = arith.mulf %11, %25 : vector<8x256xf32>
    %c0_7 = arith.constant 0 : index
    %c0_8 = arith.constant 0 : index
    %27 = vector.load %arg2[%c0_7, %c0_8] : memref<1x256xf32, #tpu.memory_space<vmem>>, vector<1x256xf32>
    %28 = vector.broadcast %27 : vector<1x256xf32> to vector<8x256xf32>
    %29 = arith.mulf %26, %28 : vector<8x256xf32>
    %c0_9 = arith.constant 0 : index
    %c0_10 = arith.constant 0 : index
    %30 = vector.load %arg3[%c0_9, %c0_10] : memref<1x256xf32, #tpu.memory_space<vmem>>, vector<1x256xf32>
    %31 = vector.broadcast %30 : vector<1x256xf32> to vector<8x256xf32>
    %32 = arith.addf %29, %31 : vector<8x256xf32>
    %cst_11 = arith.constant 5.000000e-01 : f32
    %33 = vector.broadcast %cst_11 : f32 to vector<8x256xf32>
    %34 = arith.mulf %33, %32 : vector<8x256xf32>
    %cst_12 = arith.constant 0.707106769 : f32
    %35 = vector.broadcast %cst_12 : f32 to vector<8x256xf32>
    %36 = arith.mulf %32, %35 : vector<8x256xf32>
    %cst_13 = arith.constant 0.000000e+00 : f32
    %37 = vector.broadcast %cst_13 : f32 to vector<8x256xf32>
    %38 = arith.cmpf oge, %36, %37 : vector<8x256xf32>
    %cst_14 = arith.constant 1.000000e+00 : f32
    %cst_15 = arith.constant -1.000000e+00 : f32
    %39 = vector.broadcast %cst_14 : f32 to vector<8x256xf32>
    %40 = vector.broadcast %cst_15 : f32 to vector<8x256xf32>
    %41 = arith.select %38, %39, %40 : vector<8x256xi1>, vector<8x256xf32>
    %42 = math.absf %36 : vector<8x256xf32>
    %cst_16 = arith.constant 0.327591091 : f32
    %43 = vector.broadcast %cst_16 : f32 to vector<8x256xf32>
    %44 = arith.mulf %43, %42 : vector<8x256xf32>
    %cst_17 = arith.constant 1.000000e+00 : f32
    %45 = vector.broadcast %cst_17 : f32 to vector<8x256xf32>
    %46 = arith.addf %45, %44 : vector<8x256xf32>
    %47 = tpu.reciprocal %46 {approx = true} : vector<8x256xf32> -> vector<8x256xf32>
    %cst_18 = arith.constant 1.06140542 : f32
    %48 = vector.broadcast %cst_18 : f32 to vector<8x256xf32>
    %49 = arith.mulf %48, %47 : vector<8x256xf32>
    %cst_19 = arith.constant -1.45315206 : f32
    %50 = vector.broadcast %cst_19 : f32 to vector<8x256xf32>
    %51 = arith.addf %49, %50 : vector<8x256xf32>
    %52 = arith.mulf %51, %47 : vector<8x256xf32>
    %cst_20 = arith.constant 1.42141378 : f32
    %53 = vector.broadcast %cst_20 : f32 to vector<8x256xf32>
    %54 = arith.addf %52, %53 : vector<8x256xf32>
    %55 = arith.mulf %54, %47 : vector<8x256xf32>
    %cst_21 = arith.constant -0.284496725 : f32
    %56 = vector.broadcast %cst_21 : f32 to vector<8x256xf32>
    %57 = arith.addf %55, %56 : vector<8x256xf32>
    %58 = arith.mulf %57, %47 : vector<8x256xf32>
    %cst_22 = arith.constant 0.254829586 : f32
    %59 = vector.broadcast %cst_22 : f32 to vector<8x256xf32>
    %60 = arith.addf %58, %59 : vector<8x256xf32>
    %61 = arith.mulf %60, %47 : vector<8x256xf32>
    %cst_23 = arith.constant 0.000000e+00 : f32
    %62 = vector.broadcast %cst_23 : f32 to vector<8x256xf32>
    %63 = arith.subf %62, %42 : vector<8x256xf32>
    %64 = arith.mulf %63, %42 : vector<8x256xf32>
    %65 = math.exp %64 : vector<8x256xf32>
    %66 = arith.mulf %61, %65 : vector<8x256xf32>
    %cst_24 = arith.constant 1.000000e+00 : f32
    %67 = vector.broadcast %cst_24 : f32 to vector<8x256xf32>
    %68 = arith.subf %67, %66 : vector<8x256xf32>
    %69 = arith.mulf %41, %68 : vector<8x256xf32>
    %cst_25 = arith.constant 1.000000e+00 : f32
    %70 = vector.broadcast %cst_25 : f32 to vector<8x256xf32>
    %71 = arith.addf %70, %69 : vector<8x256xf32>
    %72 = arith.mulf %34, %71 : vector<8x256xf32>
    %c17_i32 = arith.constant 17 : i32
    %73 = tpu.dynamic_rotate %72 by %c17_i32 dim 1 : vector<8x256xf32>, i32 -> vector<8x256xf32>
    %c0_26 = arith.constant 0 : index
    %c0_27 = arith.constant 0 : index
    %c0_28 = arith.constant 0 : index
    %74 = vector.load %arg10[%c0_26, %c0_27, %c0_28] : memref<9x1x256xf32, #tpu.memory_space<vmem>>, vector<1x1x256xf32>
    %75 = vector.shape_cast %74 : vector<1x1x256xf32> to vector<1x256xf32>
    %76 = vector.broadcast %75 : vector<1x256xf32> to vector<8x256xf32>
    %77 = arith.mulf %73, %76 : vector<8x256xf32>
    %c16_i32_29 = arith.constant 16 : i32
    %78 = tpu.dynamic_rotate %72 by %c16_i32_29 dim 1 : vector<8x256xf32>, i32 -> vector<8x256xf32>
    %c1 = arith.constant 1 : index
    %c0_30 = arith.constant 0 : index
    %c0_31 = arith.constant 0 : index
    %79 = vector.load %arg10[%c1, %c0_30, %c0_31] : memref<9x1x256xf32, #tpu.memory_space<vmem>>, vector<1x1x256xf32>
    %80 = vector.shape_cast %79 : vector<1x1x256xf32> to vector<1x256xf32>
    %81 = vector.broadcast %80 : vector<1x256xf32> to vector<8x256xf32>
    %82 = arith.mulf %78, %81 : vector<8x256xf32>
    %c15_i32 = arith.constant 15 : i32
    %83 = tpu.dynamic_rotate %72 by %c15_i32 dim 1 : vector<8x256xf32>, i32 -> vector<8x256xf32>
    %c2 = arith.constant 2 : index
    %c0_32 = arith.constant 0 : index
    %c0_33 = arith.constant 0 : index
    %84 = vector.load %arg10[%c2, %c0_32, %c0_33] : memref<9x1x256xf32, #tpu.memory_space<vmem>>, vector<1x1x256xf32>
    %85 = vector.shape_cast %84 : vector<1x1x256xf32> to vector<1x256xf32>
    %86 = vector.broadcast %85 : vector<1x256xf32> to vector<8x256xf32>
    %87 = arith.mulf %83, %86 : vector<8x256xf32>
    %c1_i32 = arith.constant 1 : i32
    %88 = tpu.dynamic_rotate %72 by %c1_i32 dim 1 : vector<8x256xf32>, i32 -> vector<8x256xf32>
    %c3 = arith.constant 3 : index
    %c0_34 = arith.constant 0 : index
    %c0_35 = arith.constant 0 : index
    %89 = vector.load %arg10[%c3, %c0_34, %c0_35] : memref<9x1x256xf32, #tpu.memory_space<vmem>>, vector<1x1x256xf32>
    %90 = vector.shape_cast %89 : vector<1x1x256xf32> to vector<1x256xf32>
    %91 = vector.broadcast %90 : vector<1x256xf32> to vector<8x256xf32>
    %92 = arith.mulf %88, %91 : vector<8x256xf32>
    %c255_i32 = arith.constant 255 : i32
    %93 = tpu.dynamic_rotate %72 by %c255_i32 dim 1 : vector<8x256xf32>, i32 -> vector<8x256xf32>
    %c5 = arith.constant 5 : index
    %c0_36 = arith.constant 0 : index
    %c0_37 = arith.constant 0 : index
    %94 = vector.load %arg10[%c5, %c0_36, %c0_37] : memref<9x1x256xf32, #tpu.memory_space<vmem>>, vector<1x1x256xf32>
    %95 = vector.shape_cast %94 : vector<1x1x256xf32> to vector<1x256xf32>
    %96 = vector.broadcast %95 : vector<1x256xf32> to vector<8x256xf32>
    %97 = arith.mulf %93, %96 : vector<8x256xf32>
    %c241_i32 = arith.constant 241 : i32
    %98 = tpu.dynamic_rotate %72 by %c241_i32 dim 1 : vector<8x256xf32>, i32 -> vector<8x256xf32>
    %c6 = arith.constant 6 : index
    %c0_38 = arith.constant 0 : index
    %c0_39 = arith.constant 0 : index
    %99 = vector.load %arg10[%c6, %c0_38, %c0_39] : memref<9x1x256xf32, #tpu.memory_space<vmem>>, vector<1x1x256xf32>
    %100 = vector.shape_cast %99 : vector<1x1x256xf32> to vector<1x256xf32>
    %101 = vector.broadcast %100 : vector<1x256xf32> to vector<8x256xf32>
    %102 = arith.mulf %98, %101 : vector<8x256xf32>
    %c240_i32 = arith.constant 240 : i32
    %103 = tpu.dynamic_rotate %72 by %c240_i32 dim 1 : vector<8x256xf32>, i32 -> vector<8x256xf32>
    %c7 = arith.constant 7 : index
    %c0_40 = arith.constant 0 : index
    %c0_41 = arith.constant 0 : index
    %104 = vector.load %arg10[%c7, %c0_40, %c0_41] : memref<9x1x256xf32, #tpu.memory_space<vmem>>, vector<1x1x256xf32>
    %105 = vector.shape_cast %104 : vector<1x1x256xf32> to vector<1x256xf32>
    %106 = vector.broadcast %105 : vector<1x256xf32> to vector<8x256xf32>
    %107 = arith.mulf %103, %106 : vector<8x256xf32>
    %c239_i32 = arith.constant 239 : i32
    %108 = tpu.dynamic_rotate %72 by %c239_i32 dim 1 : vector<8x256xf32>, i32 -> vector<8x256xf32>
    %c8 = arith.constant 8 : index
    %c0_42 = arith.constant 0 : index
    %c0_43 = arith.constant 0 : index
    %109 = vector.load %arg10[%c8, %c0_42, %c0_43] : memref<9x1x256xf32, #tpu.memory_space<vmem>>, vector<1x1x256xf32>
    %110 = vector.shape_cast %109 : vector<1x1x256xf32> to vector<1x256xf32>
    %111 = vector.broadcast %110 : vector<1x256xf32> to vector<8x256xf32>
    %112 = arith.mulf %108, %111 : vector<8x256xf32>
    %c0_44 = arith.constant 0 : index
    %c0_45 = arith.constant 0 : index
    %113 = vector.load %arg6[%c0_44, %c0_45] : memref<4x36xbf16, #tpu.memory_space<vmem>>, vector<4x36xbf16>
    %c0_46 = arith.constant 0 : index
    %c0_47 = arith.constant 0 : index
    %114 = vector.load %arg7[%c0_46, %c0_47] : memref<4x1xf32, #tpu.memory_space<vmem>>, vector<4x1xf32>
    %115 = vector.extract_strided_slice %77 {offsets = [0, 0], sizes = [4, 256], strides = [1, 1]} : vector<8x256xf32> to vector<4x256xf32>
    %116 = vector.extract_strided_slice %82 {offsets = [0, 0], sizes = [4, 256], strides = [1, 1]} : vector<8x256xf32> to vector<4x256xf32>
    %117 = vector.extract_strided_slice %87 {offsets = [0, 0], sizes = [4, 256], strides = [1, 1]} : vector<8x256xf32> to vector<4x256xf32>
    %118 = vector.extract_strided_slice %92 {offsets = [0, 0], sizes = [4, 256], strides = [1, 1]} : vector<8x256xf32> to vector<4x256xf32>
    %119 = vector.extract_strided_slice %72 {offsets = [0, 0], sizes = [4, 256], strides = [1, 1]} : vector<8x256xf32> to vector<4x256xf32>
    %120 = vector.extract_strided_slice %97 {offsets = [0, 0], sizes = [4, 256], strides = [1, 1]} : vector<8x256xf32> to vector<4x256xf32>
    %121 = vector.extract_strided_slice %102 {offsets = [0, 0], sizes = [4, 256], strides = [1, 1]} : vector<8x256xf32> to vector<4x256xf32>
    %122 = vector.extract_strided_slice %107 {offsets = [0, 0], sizes = [4, 256], strides = [1, 1]} : vector<8x256xf32> to vector<4x256xf32>
    %123 = vector.extract_strided_slice %112 {offsets = [0, 0], sizes = [4, 256], strides = [1, 1]} : vector<8x256xf32> to vector<4x256xf32>
    %124 = tpu.concatenate %115, %116, %117, %118, %119, %120, %121, %122, %123 in 0 : vector<4x256xf32>, vector<4x256xf32>, vector<4x256xf32>, vector<4x256xf32>, vector<4x256xf32>, vector<4x256xf32>, vector<4x256xf32>, vector<4x256xf32>, vector<4x256xf32> -> vector<36x256xf32>
    %125 = arith.truncf %124 : vector<36x256xf32> to vector<36x256xbf16>
    %cst_48 = arith.constant dense<0.000000e+00> : vector<4x256xf32>
    %126 = tpu.matmul %113, %125, %cst_48 {dimension_numbers = #tpu.dot_dimension_numbers<[1], [0], [0], [1], [0, 0, 1, 1], [], []>} : vector<4x36xbf16>, vector<36x256xbf16>, vector<4x256xf32> -> vector<4x256xf32>
    %127 = vector.broadcast %114 : vector<4x1xf32> to vector<4x256xf32>
    %128 = arith.addf %126, %127 : vector<4x256xf32>
    %129 = vector.extract_strided_slice %77 {offsets = [4, 0], sizes = [4, 256], strides = [1, 1]} : vector<8x256xf32> to vector<4x256xf32>
    %130 = vector.extract_strided_slice %82 {offsets = [4, 0], sizes = [4, 256], strides = [1, 1]} : vector<8x256xf32> to vector<4x256xf32>
    %131 = vector.extract_strided_slice %87 {offsets = [4, 0], sizes = [4, 256], strides = [1, 1]} : vector<8x256xf32> to vector<4x256xf32>
    %132 = vector.extract_strided_slice %92 {offsets = [4, 0], sizes = [4, 256], strides = [1, 1]} : vector<8x256xf32> to vector<4x256xf32>
    %133 = vector.extract_strided_slice %72 {offsets = [4, 0], sizes = [4, 256], strides = [1, 1]} : vector<8x256xf32> to vector<4x256xf32>
    %134 = vector.extract_strided_slice %97 {offsets = [4, 0], sizes = [4, 256], strides = [1, 1]} : vector<8x256xf32> to vector<4x256xf32>
    %135 = vector.extract_strided_slice %102 {offsets = [4, 0], sizes = [4, 256], strides = [1, 1]} : vector<8x256xf32> to vector<4x256xf32>
    %136 = vector.extract_strided_slice %107 {offsets = [4, 0], sizes = [4, 256], strides = [1, 1]} : vector<8x256xf32> to vector<4x256xf32>
    %137 = vector.extract_strided_slice %112 {offsets = [4, 0], sizes = [4, 256], strides = [1, 1]} : vector<8x256xf32> to vector<4x256xf32>
    %138 = tpu.concatenate %129, %130, %131, %132, %133, %134, %135, %136, %137 in 0 : vector<4x256xf32>, vector<4x256xf32>, vector<4x256xf32>, vector<4x256xf32>, vector<4x256xf32>, vector<4x256xf32>, vector<4x256xf32>, vector<4x256xf32>, vector<4x256xf32> -> vector<36x256xf32>
    %139 = arith.truncf %138 : vector<36x256xf32> to vector<36x256xbf16>
    %cst_49 = arith.constant dense<0.000000e+00> : vector<4x256xf32>
    %140 = tpu.matmul %113, %139, %cst_49 {dimension_numbers = #tpu.dot_dimension_numbers<[1], [0], [0], [1], [0, 0, 1, 1], [], []>} : vector<4x36xbf16>, vector<36x256xbf16>, vector<4x256xf32> -> vector<4x256xf32>
    %141 = vector.broadcast %114 : vector<4x1xf32> to vector<4x256xf32>
    %142 = arith.addf %140, %141 : vector<4x256xf32>
    %143 = tpu.concatenate %128, %142 in 0 : vector<4x256xf32>, vector<4x256xf32> -> vector<8x256xf32>
    %c16_i32_50 = arith.constant 16 : i32
    %144 = tpu.dynamic_rotate %143 by %c16_i32_50 dim 1 : vector<8x256xf32>, i32 -> vector<8x256xf32>
    %145 = arith.addf %143, %144 : vector<8x256xf32>
    %c32_i32_51 = arith.constant 32 : i32
    %146 = tpu.dynamic_rotate %145 by %c32_i32_51 dim 1 : vector<8x256xf32>, i32 -> vector<8x256xf32>
    %147 = arith.addf %145, %146 : vector<8x256xf32>
    %c64_i32_52 = arith.constant 64 : i32
    %148 = tpu.dynamic_rotate %147 by %c64_i32_52 dim 1 : vector<8x256xf32>, i32 -> vector<8x256xf32>
    %149 = arith.addf %147, %148 : vector<8x256xf32>
    %c128_i32_53 = arith.constant 128 : i32
    %150 = tpu.dynamic_rotate %149 by %c128_i32_53 dim 1 : vector<8x256xf32>, i32 -> vector<8x256xf32>
    %151 = arith.addf %149, %150 : vector<8x256xf32>
    %cst_54 = arith.constant 6.250000e-02 : f32
    %152 = vector.broadcast %cst_54 : f32 to vector<8x256xf32>
    %153 = arith.mulf %151, %152 : vector<8x256xf32>
    %154 = arith.subf %143, %153 : vector<8x256xf32>
    %155 = arith.mulf %154, %154 : vector<8x256xf32>
    %c16_i32_55 = arith.constant 16 : i32
    %156 = tpu.dynamic_rotate %155 by %c16_i32_55 dim 1 : vector<8x256xf32>, i32 -> vector<8x256xf32>
    %157 = arith.addf %155, %156 : vector<8x256xf32>
    %c32_i32_56 = arith.constant 32 : i32
    %158 = tpu.dynamic_rotate %157 by %c32_i32_56 dim 1 : vector<8x256xf32>, i32 -> vector<8x256xf32>
    %159 = arith.addf %157, %158 : vector<8x256xf32>
    %c64_i32_57 = arith.constant 64 : i32
    %160 = tpu.dynamic_rotate %159 by %c64_i32_57 dim 1 : vector<8x256xf32>, i32 -> vector<8x256xf32>
    %161 = arith.addf %159, %160 : vector<8x256xf32>
    %c128_i32_58 = arith.constant 128 : i32
    %162 = tpu.dynamic_rotate %161 by %c128_i32_58 dim 1 : vector<8x256xf32>, i32 -> vector<8x256xf32>
    %163 = arith.addf %161, %162 : vector<8x256xf32>
    %cst_59 = arith.constant 6.250000e-02 : f32
    %164 = vector.broadcast %cst_59 : f32 to vector<8x256xf32>
    %165 = arith.mulf %163, %164 : vector<8x256xf32>
    %cst_60 = arith.constant 9.99999974E-6 : f32
    %166 = vector.broadcast %cst_60 : f32 to vector<8x256xf32>
    %167 = arith.addf %165, %166 : vector<8x256xf32>
    %168 = math.rsqrt %167 : vector<8x256xf32>
    %169 = arith.mulf %154, %168 : vector<8x256xf32>
    %c0_61 = arith.constant 0 : index
    %c0_62 = arith.constant 0 : index
    %170 = vector.load %arg4[%c0_61, %c0_62] : memref<1x256xf32, #tpu.memory_space<vmem>>, vector<1x256xf32>
    %171 = vector.broadcast %170 : vector<1x256xf32> to vector<8x256xf32>
    %172 = arith.mulf %169, %171 : vector<8x256xf32>
    %c0_63 = arith.constant 0 : index
    %c0_64 = arith.constant 0 : index
    %173 = vector.load %arg5[%c0_63, %c0_64] : memref<1x256xf32, #tpu.memory_space<vmem>>, vector<1x256xf32>
    %174 = vector.broadcast %173 : vector<1x256xf32> to vector<8x256xf32>
    %175 = arith.addf %172, %174 : vector<8x256xf32>
    %cst_65 = arith.constant 5.000000e-01 : f32
    %176 = vector.broadcast %cst_65 : f32 to vector<8x256xf32>
    %177 = arith.mulf %176, %175 : vector<8x256xf32>
    %cst_66 = arith.constant 0.707106769 : f32
    %178 = vector.broadcast %cst_66 : f32 to vector<8x256xf32>
    %179 = arith.mulf %175, %178 : vector<8x256xf32>
    %cst_67 = arith.constant 0.000000e+00 : f32
    %180 = vector.broadcast %cst_67 : f32 to vector<8x256xf32>
    %181 = arith.cmpf oge, %179, %180 : vector<8x256xf32>
    %cst_68 = arith.constant 1.000000e+00 : f32
    %cst_69 = arith.constant -1.000000e+00 : f32
    %182 = vector.broadcast %cst_68 : f32 to vector<8x256xf32>
    %183 = vector.broadcast %cst_69 : f32 to vector<8x256xf32>
    %184 = arith.select %181, %182, %183 : vector<8x256xi1>, vector<8x256xf32>
    %185 = math.absf %179 : vector<8x256xf32>
    %cst_70 = arith.constant 0.327591091 : f32
    %186 = vector.broadcast %cst_70 : f32 to vector<8x256xf32>
    %187 = arith.mulf %186, %185 : vector<8x256xf32>
    %cst_71 = arith.constant 1.000000e+00 : f32
    %188 = vector.broadcast %cst_71 : f32 to vector<8x256xf32>
    %189 = arith.addf %188, %187 : vector<8x256xf32>
    %190 = tpu.reciprocal %189 {approx = true} : vector<8x256xf32> -> vector<8x256xf32>
    %cst_72 = arith.constant 1.06140542 : f32
    %191 = vector.broadcast %cst_72 : f32 to vector<8x256xf32>
    %192 = arith.mulf %191, %190 : vector<8x256xf32>
    %cst_73 = arith.constant -1.45315206 : f32
    %193 = vector.broadcast %cst_73 : f32 to vector<8x256xf32>
    %194 = arith.addf %192, %193 : vector<8x256xf32>
    %195 = arith.mulf %194, %190 : vector<8x256xf32>
    %cst_74 = arith.constant 1.42141378 : f32
    %196 = vector.broadcast %cst_74 : f32 to vector<8x256xf32>
    %197 = arith.addf %195, %196 : vector<8x256xf32>
    %198 = arith.mulf %197, %190 : vector<8x256xf32>
    %cst_75 = arith.constant -0.284496725 : f32
    %199 = vector.broadcast %cst_75 : f32 to vector<8x256xf32>
    %200 = arith.addf %198, %199 : vector<8x256xf32>
    %201 = arith.mulf %200, %190 : vector<8x256xf32>
    %cst_76 = arith.constant 0.254829586 : f32
    %202 = vector.broadcast %cst_76 : f32 to vector<8x256xf32>
    %203 = arith.addf %201, %202 : vector<8x256xf32>
    %204 = arith.mulf %203, %190 : vector<8x256xf32>
    %cst_77 = arith.constant 0.000000e+00 : f32
    %205 = vector.broadcast %cst_77 : f32 to vector<8x256xf32>
    %206 = arith.subf %205, %185 : vector<8x256xf32>
    %207 = arith.mulf %206, %185 : vector<8x256xf32>
    %208 = math.exp %207 : vector<8x256xf32>
    %209 = arith.mulf %204, %208 : vector<8x256xf32>
    %cst_78 = arith.constant 1.000000e+00 : f32
    %210 = vector.broadcast %cst_78 : f32 to vector<8x256xf32>
    %211 = arith.subf %210, %209 : vector<8x256xf32>
    %212 = arith.mulf %184, %211 : vector<8x256xf32>
    %cst_79 = arith.constant 1.000000e+00 : f32
    %213 = vector.broadcast %cst_79 : f32 to vector<8x256xf32>
    %214 = arith.addf %213, %212 : vector<8x256xf32>
    %215 = arith.mulf %177, %214 : vector<8x256xf32>
    %c17_i32_80 = arith.constant 17 : i32
    %216 = tpu.dynamic_rotate %215 by %c17_i32_80 dim 1 : vector<8x256xf32>, i32 -> vector<8x256xf32>
    %c0_81 = arith.constant 0 : index
    %c0_82 = arith.constant 0 : index
    %c0_83 = arith.constant 0 : index
    %217 = vector.load %arg10[%c0_81, %c0_82, %c0_83] : memref<9x1x256xf32, #tpu.memory_space<vmem>>, vector<1x1x256xf32>
    %218 = vector.shape_cast %217 : vector<1x1x256xf32> to vector<1x256xf32>
    %219 = vector.broadcast %218 : vector<1x256xf32> to vector<8x256xf32>
    %220 = arith.mulf %216, %219 : vector<8x256xf32>
    %c16_i32_84 = arith.constant 16 : i32
    %221 = tpu.dynamic_rotate %215 by %c16_i32_84 dim 1 : vector<8x256xf32>, i32 -> vector<8x256xf32>
    %c1_85 = arith.constant 1 : index
    %c0_86 = arith.constant 0 : index
    %c0_87 = arith.constant 0 : index
    %222 = vector.load %arg10[%c1_85, %c0_86, %c0_87] : memref<9x1x256xf32, #tpu.memory_space<vmem>>, vector<1x1x256xf32>
    %223 = vector.shape_cast %222 : vector<1x1x256xf32> to vector<1x256xf32>
    %224 = vector.broadcast %223 : vector<1x256xf32> to vector<8x256xf32>
    %225 = arith.mulf %221, %224 : vector<8x256xf32>
    %c15_i32_88 = arith.constant 15 : i32
    %226 = tpu.dynamic_rotate %215 by %c15_i32_88 dim 1 : vector<8x256xf32>, i32 -> vector<8x256xf32>
    %c2_89 = arith.constant 2 : index
    %c0_90 = arith.constant 0 : index
    %c0_91 = arith.constant 0 : index
    %227 = vector.load %arg10[%c2_89, %c0_90, %c0_91] : memref<9x1x256xf32, #tpu.memory_space<vmem>>, vector<1x1x256xf32>
    %228 = vector.shape_cast %227 : vector<1x1x256xf32> to vector<1x256xf32>
    %229 = vector.broadcast %228 : vector<1x256xf32> to vector<8x256xf32>
    %230 = arith.mulf %226, %229 : vector<8x256xf32>
    %c1_i32_92 = arith.constant 1 : i32
    %231 = tpu.dynamic_rotate %215 by %c1_i32_92 dim 1 : vector<8x256xf32>, i32 -> vector<8x256xf32>
    %c3_93 = arith.constant 3 : index
    %c0_94 = arith.constant 0 : index
    %c0_95 = arith.constant 0 : index
    %232 = vector.load %arg10[%c3_93, %c0_94, %c0_95] : memref<9x1x256xf32, #tpu.memory_space<vmem>>, vector<1x1x256xf32>
    %233 = vector.shape_cast %232 : vector<1x1x256xf32> to vector<1x256xf32>
    %234 = vector.broadcast %233 : vector<1x256xf32> to vector<8x256xf32>
    %235 = arith.mulf %231, %234 : vector<8x256xf32>
    %c255_i32_96 = arith.constant 255 : i32
    %236 = tpu.dynamic_rotate %215 by %c255_i32_96 dim 1 : vector<8x256xf32>, i32 -> vector<8x256xf32>
    %c5_97 = arith.constant 5 : index
    %c0_98 = arith.constant 0 : index
    %c0_99 = arith.constant 0 : index
    %237 = vector.load %arg10[%c5_97, %c0_98, %c0_99] : memref<9x1x256xf32, #tpu.memory_space<vmem>>, vector<1x1x256xf32>
    %238 = vector.shape_cast %237 : vector<1x1x256xf32> to vector<1x256xf32>
    %239 = vector.broadcast %238 : vector<1x256xf32> to vector<8x256xf32>
    %240 = arith.mulf %236, %239 : vector<8x256xf32>
    %c241_i32_100 = arith.constant 241 : i32
    %241 = tpu.dynamic_rotate %215 by %c241_i32_100 dim 1 : vector<8x256xf32>, i32 -> vector<8x256xf32>
    %c6_101 = arith.constant 6 : index
    %c0_102 = arith.constant 0 : index
    %c0_103 = arith.constant 0 : index
    %242 = vector.load %arg10[%c6_101, %c0_102, %c0_103] : memref<9x1x256xf32, #tpu.memory_space<vmem>>, vector<1x1x256xf32>
    %243 = vector.shape_cast %242 : vector<1x1x256xf32> to vector<1x256xf32>
    %244 = vector.broadcast %243 : vector<1x256xf32> to vector<8x256xf32>
    %245 = arith.mulf %241, %244 : vector<8x256xf32>
    %c240_i32_104 = arith.constant 240 : i32
    %246 = tpu.dynamic_rotate %215 by %c240_i32_104 dim 1 : vector<8x256xf32>, i32 -> vector<8x256xf32>
    %c7_105 = arith.constant 7 : index
    %c0_106 = arith.constant 0 : index
    %c0_107 = arith.constant 0 : index
    %247 = vector.load %arg10[%c7_105, %c0_106, %c0_107] : memref<9x1x256xf32, #tpu.memory_space<vmem>>, vector<1x1x256xf32>
    %248 = vector.shape_cast %247 : vector<1x1x256xf32> to vector<1x256xf32>
    %249 = vector.broadcast %248 : vector<1x256xf32> to vector<8x256xf32>
    %250 = arith.mulf %246, %249 : vector<8x256xf32>
    %c239_i32_108 = arith.constant 239 : i32
    %251 = tpu.dynamic_rotate %215 by %c239_i32_108 dim 1 : vector<8x256xf32>, i32 -> vector<8x256xf32>
    %c8_109 = arith.constant 8 : index
    %c0_110 = arith.constant 0 : index
    %c0_111 = arith.constant 0 : index
    %252 = vector.load %arg10[%c8_109, %c0_110, %c0_111] : memref<9x1x256xf32, #tpu.memory_space<vmem>>, vector<1x1x256xf32>
    %253 = vector.shape_cast %252 : vector<1x1x256xf32> to vector<1x256xf32>
    %254 = vector.broadcast %253 : vector<1x256xf32> to vector<8x256xf32>
    %255 = arith.mulf %251, %254 : vector<8x256xf32>
    %c0_112 = arith.constant 0 : index
    %c0_113 = arith.constant 0 : index
    %256 = vector.load %arg8[%c0_112, %c0_113] : memref<4x36xbf16, #tpu.memory_space<vmem>>, vector<4x36xbf16>
    %c0_114 = arith.constant 0 : index
    %c0_115 = arith.constant 0 : index
    %257 = vector.load %arg9[%c0_114, %c0_115] : memref<4x1xf32, #tpu.memory_space<vmem>>, vector<4x1xf32>
    %258 = vector.extract_strided_slice %220 {offsets = [0, 0], sizes = [4, 256], strides = [1, 1]} : vector<8x256xf32> to vector<4x256xf32>
    %259 = vector.extract_strided_slice %225 {offsets = [0, 0], sizes = [4, 256], strides = [1, 1]} : vector<8x256xf32> to vector<4x256xf32>
    %260 = vector.extract_strided_slice %230 {offsets = [0, 0], sizes = [4, 256], strides = [1, 1]} : vector<8x256xf32> to vector<4x256xf32>
    %261 = vector.extract_strided_slice %235 {offsets = [0, 0], sizes = [4, 256], strides = [1, 1]} : vector<8x256xf32> to vector<4x256xf32>
    %262 = vector.extract_strided_slice %215 {offsets = [0, 0], sizes = [4, 256], strides = [1, 1]} : vector<8x256xf32> to vector<4x256xf32>
    %263 = vector.extract_strided_slice %240 {offsets = [0, 0], sizes = [4, 256], strides = [1, 1]} : vector<8x256xf32> to vector<4x256xf32>
    %264 = vector.extract_strided_slice %245 {offsets = [0, 0], sizes = [4, 256], strides = [1, 1]} : vector<8x256xf32> to vector<4x256xf32>
    %265 = vector.extract_strided_slice %250 {offsets = [0, 0], sizes = [4, 256], strides = [1, 1]} : vector<8x256xf32> to vector<4x256xf32>
    %266 = vector.extract_strided_slice %255 {offsets = [0, 0], sizes = [4, 256], strides = [1, 1]} : vector<8x256xf32> to vector<4x256xf32>
    %267 = tpu.concatenate %258, %259, %260, %261, %262, %263, %264, %265, %266 in 0 : vector<4x256xf32>, vector<4x256xf32>, vector<4x256xf32>, vector<4x256xf32>, vector<4x256xf32>, vector<4x256xf32>, vector<4x256xf32>, vector<4x256xf32>, vector<4x256xf32> -> vector<36x256xf32>
    %268 = arith.truncf %267 : vector<36x256xf32> to vector<36x256xbf16>
    %cst_116 = arith.constant dense<0.000000e+00> : vector<4x256xf32>
    %269 = tpu.matmul %256, %268, %cst_116 {dimension_numbers = #tpu.dot_dimension_numbers<[1], [0], [0], [1], [0, 0, 1, 1], [], []>} : vector<4x36xbf16>, vector<36x256xbf16>, vector<4x256xf32> -> vector<4x256xf32>
    %270 = vector.broadcast %257 : vector<4x1xf32> to vector<4x256xf32>
    %271 = arith.addf %269, %270 : vector<4x256xf32>
    %272 = vector.extract_strided_slice %220 {offsets = [4, 0], sizes = [4, 256], strides = [1, 1]} : vector<8x256xf32> to vector<4x256xf32>
    %273 = vector.extract_strided_slice %225 {offsets = [4, 0], sizes = [4, 256], strides = [1, 1]} : vector<8x256xf32> to vector<4x256xf32>
    %274 = vector.extract_strided_slice %230 {offsets = [4, 0], sizes = [4, 256], strides = [1, 1]} : vector<8x256xf32> to vector<4x256xf32>
    %275 = vector.extract_strided_slice %235 {offsets = [4, 0], sizes = [4, 256], strides = [1, 1]} : vector<8x256xf32> to vector<4x256xf32>
    %276 = vector.extract_strided_slice %215 {offsets = [4, 0], sizes = [4, 256], strides = [1, 1]} : vector<8x256xf32> to vector<4x256xf32>
    %277 = vector.extract_strided_slice %240 {offsets = [4, 0], sizes = [4, 256], strides = [1, 1]} : vector<8x256xf32> to vector<4x256xf32>
    %278 = vector.extract_strided_slice %245 {offsets = [4, 0], sizes = [4, 256], strides = [1, 1]} : vector<8x256xf32> to vector<4x256xf32>
    %279 = vector.extract_strided_slice %250 {offsets = [4, 0], sizes = [4, 256], strides = [1, 1]} : vector<8x256xf32> to vector<4x256xf32>
    %280 = vector.extract_strided_slice %255 {offsets = [4, 0], sizes = [4, 256], strides = [1, 1]} : vector<8x256xf32> to vector<4x256xf32>
    %281 = tpu.concatenate %272, %273, %274, %275, %276, %277, %278, %279, %280 in 0 : vector<4x256xf32>, vector<4x256xf32>, vector<4x256xf32>, vector<4x256xf32>, vector<4x256xf32>, vector<4x256xf32>, vector<4x256xf32>, vector<4x256xf32>, vector<4x256xf32> -> vector<36x256xf32>
    %282 = arith.truncf %281 : vector<36x256xf32> to vector<36x256xbf16>
    %cst_117 = arith.constant dense<0.000000e+00> : vector<4x256xf32>
    %283 = tpu.matmul %256, %282, %cst_117 {dimension_numbers = #tpu.dot_dimension_numbers<[1], [0], [0], [1], [0, 0, 1, 1], [], []>} : vector<4x36xbf16>, vector<36x256xbf16>, vector<4x256xf32> -> vector<4x256xf32>
    %284 = vector.broadcast %257 : vector<4x1xf32> to vector<4x256xf32>
    %285 = arith.addf %283, %284 : vector<4x256xf32>
    %286 = tpu.concatenate %271, %285 in 0 : vector<4x256xf32>, vector<4x256xf32> -> vector<8x256xf32>
    %287 = arith.addf %286, %0 : vector<8x256xf32>
    %c0_118 = arith.constant 0 : index
    %c0_119 = arith.constant 0 : index
    %288 = vector.load %arg11[%c0_118, %c0_119] : memref<8x256xf32, #tpu.memory_space<vmem>>, vector<8x256xf32>
    tpu.vector_store %arg11[%c0_118, %c0_119], %287 {strides = array<i32>} : memref<8x256xf32, #tpu.memory_space<vmem>>, vector<8x256xf32>,
    return
  }
  func.func @transform_0(%arg0: i32) -> (i32, i32) {
    %c0_i32 = arith.constant 0 : i32
    %c0_i32_0 = arith.constant 0 : i32
    return %arg0, %c0_i32 : i32, i32
  }
  func.func @transform_1(%arg0: i32) -> (i32, i32) {
    %c0_i32 = arith.constant 0 : i32
    %c0_i32_0 = arith.constant 0 : i32
    %c0_i32_1 = arith.constant 0 : i32
    return %c0_i32, %c0_i32_0 : i32, i32
  }
  func.func @transform_2(%arg0: i32) -> (i32, i32) {
    %c0_i32 = arith.constant 0 : i32
    %c0_i32_0 = arith.constant 0 : i32
    %c0_i32_1 = arith.constant 0 : i32
    return %c0_i32, %c0_i32_0 : i32, i32
  }
  func.func @transform_3(%arg0: i32) -> (i32, i32) {
    %c0_i32 = arith.constant 0 : i32
    %c0_i32_0 = arith.constant 0 : i32
    %c0_i32_1 = arith.constant 0 : i32
    return %c0_i32, %c0_i32_0 : i32, i32
  }
  func.func @transform_4(%arg0: i32) -> (i32, i32) {
    %c0_i32 = arith.constant 0 : i32
    %c0_i32_0 = arith.constant 0 : i32
    %c0_i32_1 = arith.constant 0 : i32
    return %c0_i32, %c0_i32_0 : i32, i32
  }
  func.func @transform_5(%arg0: i32) -> (i32, i32) {
    %c0_i32 = arith.constant 0 : i32
    %c0_i32_0 = arith.constant 0 : i32
    %c0_i32_1 = arith.constant 0 : i32
    return %c0_i32, %c0_i32_0 : i32, i32
  }
  func.func @transform_6(%arg0: i32) -> (i32, i32) {
    %c0_i32 = arith.constant 0 : i32
    %c0_i32_0 = arith.constant 0 : i32
    %c0_i32_1 = arith.constant 0 : i32
    return %c0_i32, %c0_i32_0 : i32, i32
  }
  func.func @transform_7(%arg0: i32) -> (i32, i32) {
    %c0_i32 = arith.constant 0 : i32
    %c0_i32_0 = arith.constant 0 : i32
    %c0_i32_1 = arith.constant 0 : i32
    return %c0_i32, %c0_i32_0 : i32, i32
  }
  func.func @transform_8(%arg0: i32) -> (i32, i32) {
    %c0_i32 = arith.constant 0 : i32
    %c0_i32_0 = arith.constant 0 : i32
    %c0_i32_1 = arith.constant 0 : i32
    return %c0_i32, %c0_i32_0 : i32, i32
  }
  func.func @transform_9(%arg0: i32) -> (i32, i32, i32) {
    %c0_i32 = arith.constant 0 : i32
    %c0_i32_0 = arith.constant 0 : i32
    %c0_i32_1 = arith.constant 0 : i32
    %c0_i32_2 = arith.constant 0 : i32
    return %c0_i32, %c0_i32_0, %c0_i32_1 : i32, i32, i32
  }
  func.func @transform_10(%arg0: i32) -> (i32, i32) {
    %c0_i32 = arith.constant 0 : i32
    %c0_i32_0 = arith.constant 0 : i32
    return %arg0, %c0_i32 : i32, i32
  }
}

</mosaic_0001>

<llo_original>
// kernel: tpu_custom_call.1
$region0: #{tpu_custom_call.1}
  #allocation0 [shape = 'u32[]', space=smem, size = 0x4, offset = 0x4, fixed_abs, tag = 'smem constant byte address 0x4 - core index']
  #allocation1 [shape = 'u32[144,128]{1,0:T(1,128)}', space=vmem, size = 0x12000, scoped, tag = 'internal scratch']
  %s0 = inlined_call_operand.hbm [shape: f32[8,256], index: 0, kind: input, shape index: {}]
  %s1 = inlined_call_operand.vmem [shape: f32[1,256], index: 1, kind: input, shape index: {}]
  %s2 = inlined_call_operand.vmem [shape: f32[1,256], index: 2, kind: input, shape index: {}]
  %s3 = inlined_call_operand.vmem [shape: f32[1,256], index: 3, kind: input, shape index: {}]
  %s4 = inlined_call_operand.vmem [shape: f32[1,256], index: 4, kind: input, shape index: {}]
  %s5 = inlined_call_operand.vmem [shape: bf16[4,36], index: 5, kind: input, shape index: {}]
  %s6 = inlined_call_operand.vmem [shape: f32[4,1], index: 6, kind: input, shape index: {}]
  %s7 = inlined_call_operand.vmem [shape: bf16[4,36], index: 7, kind: input, shape index: {}]
  %s8 = inlined_call_operand.vmem [shape: f32[4,1], index: 8, kind: input, shape index: {}]
  %s9 = inlined_call_operand.vmem [shape: f32[9,1,256], index: 9, kind: input, shape index: {}]
  %s10 = inlined_call_operand.hbm [shape: f32[8,256], index: 10, kind: output, shape index: {}]
  %s11 = sld [smem:[#allocation0]]
  $region54: #{tpu_custom_call.1} parent=0
    _
  %s13 = ssub.s32 1, %s11
  %s14 = scalar_select 0, %s13, %s11
  $region1: #{tpu_custom_call.1} parent=0
    #allocation2 [shape = 'u8[8192]{0}', space=vmem, size = 0x2000, scoped, tag = 'input window, operand 0, single buffered']
    #allocation3 [shape = 's32[1]{0}', space=sflag, size = 0x4, scoped, tag = 'scoped memory for tpu_custom_call.1']
    #allocation4 [shape = 's32[1]{0}', space=sflag, size = 0x4, scoped, tag = 'scoped memory for tpu_custom_call.1']
    #allocation5 [shape = 'u8[8192]{0}', space=vmem, size = 0x2000, scoped, tag = 'output window, operand 0, single buffered']
    %15 = vsyncpa [#allocation3], 0
    %16 = vsyncpa [#allocation4], 0
    // Predicated region
    $region2: #{tpu_custom_call.1} parent=1 // pred_check
      _
    $region3: #{tpu_custom_call.1} parent=1 // pred_check_branch
      %18 = sbr.rel (0) target = $region5
    $region4: #{tpu_custom_call.1} parent=1 // pred_region
      %s20 = ssub.s32 256, 256
      %21 = vsyncadd [#allocation3], %s20
      %s23 = sshll.u32 [#allocation2], 4
      %s24 = int_to_ptr.vmem [resolvable:$true] %s23
      %26 = dma.hbm_to_vmem [thread:$0]  %s0, 256, %s24, [#allocation3]
    $region5: #{tpu_custom_call.1} parent=1 // pred_fallthru
      _
    // Predicated region
    $region6: #{tpu_custom_call.1} parent=1 // pred_check
      _
    $region7: #{tpu_custom_call.1} parent=1 // pred_check_branch
      %28 = sbr.rel (0) target = $region9
    $region8: #{tpu_custom_call.1} parent=1 // pred_region
      _
    $region9: #{tpu_custom_call.1} parent=1 // pred_fallthru
      _
    // Predicated region
    $region10: #{tpu_custom_call.1} parent=1 // pred_check
      _
    $region11: #{tpu_custom_call.1} parent=1 // pred_check_branch
      %30 = sbr.rel (0) target = $region13
    $region12: #{tpu_custom_call.1} parent=1 // pred_region
      _
    $region13: #{tpu_custom_call.1} parent=1 // pred_fallthru
      _
    // Predicated region
    $region14: #{tpu_custom_call.1} parent=1 // pred_check
      _
    $region15: #{tpu_custom_call.1} parent=1 // pred_check_branch
      %32 = sbr.rel (0) target = $region17
    $region16: #{tpu_custom_call.1} parent=1 // pred_region
      _
    $region17: #{tpu_custom_call.1} parent=1 // pred_fallthru
      _
    // Predicated region
    $region18: #{tpu_custom_call.1} parent=1 // pred_check
      _
    $region19: #{tpu_custom_call.1} parent=1 // pred_check_branch
      %34 = sbr.rel (0) target = $region21
    $region20: #{tpu_custom_call.1} parent=1 // pred_region
      _
    $region21: #{tpu_custom_call.1} parent=1 // pred_fallthru
      _
    // Predicated region
    $region22: #{tpu_custom_call.1} parent=1 // pred_check
      _
    $region23: #{tpu_custom_call.1} parent=1 // pred_check_branch
      %36 = sbr.rel (0) target = $region25
    $region24: #{tpu_custom_call.1} parent=1 // pred_region
      _
    $region25: #{tpu_custom_call.1} parent=1 // pred_fallthru
      _
    // Predicated region
    $region26: #{tpu_custom_call.1} parent=1 // pred_check
      _
    $region27: #{tpu_custom_call.1} parent=1 // pred_check_branch
      %38 = sbr.rel (0) target = $region29
    $region28: #{tpu_custom_call.1} parent=1 // pred_region
      _
    $region29: #{tpu_custom_call.1} parent=1 // pred_fallthru
      _
    // Predicated region
    $region30: #{tpu_custom_call.1} parent=1 // pred_check
      _
    $region31: #{tpu_custom_call.1} parent=1 // pred_check_branch
      %40 = sbr.rel (0) target = $region33
    $region32: #{tpu_custom_call.1} parent=1 // pred_region
      _
    $region33: #{tpu_custom_call.1} parent=1 // pred_fallthru
      _
    // Predicated region
    $region34: #{tpu_custom_call.1} parent=1 // pred_check
      _
    $region35: #{tpu_custom_call.1} parent=1 // pred_check_branch
      %42 = sbr.rel (0) target = $region37
    $region36: #{tpu_custom_call.1} parent=1 // pred_region
      _
    $region37: #{tpu_custom_call.1} parent=1 // pred_fallthru
      _
    // Predicated region
    $region38: #{tpu_custom_call.1} parent=1 // pred_check
      _
    $region39: #{tpu_custom_call.1} parent=1 // pred_check_branch
      %44 = sbr.rel (0) target = $region41
    $region40: #{tpu_custom_call.1} parent=1 // pred_region
      _
    $region41: #{tpu_custom_call.1} parent=1 // pred_fallthru
      _
    // Predicated region
    $region42: #{tpu_custom_call.1} parent=1 // pred_check
      _
    $region43: #{tpu_custom_call.1} parent=1 // pred_check_branch
      %46 = sbr.rel (0) target = $region45
    $region44: #{tpu_custom_call.1} parent=1 // pred_region
      %47 = dma.done [#allocation3], 256
    $region45: #{tpu_custom_call.1} parent=1 // pred_fallthru
      _
    %v49 = vld [vmem:[#allocation2] sm:$0xff]
    %v50 = vld [vmem:[#allocation2 + $0x8] sm:$0xff]
    %51 = vrot.lane.b32.xlu0 %v49, 16
    %v52 = vpop.permute.xlu0 %51
    %53 = vrot.lane.b32.xlu0 %v50, 16
    %v54 = vpop.permute.xlu0 %53
    %v55 = vlaneseq
    %v56 = vand.u32 %v55, 127
    %vm57 = vcmp.lt.s32.totalorder %v56, 16
    %v58 = vsel %vm57, %v52, %v54
    %v59 = vsel %vm57, %v54, %v52
    %v60 = vadd.f32 %v49, %v59
    %v61 = vadd.f32 %v50, %v58
    %62 = vrot.lane.b32.xlu0 %v60, 32
    %v63 = vpop.permute.xlu0 %62
    %64 = vrot.lane.b32.xlu0 %v61, 32
    %v65 = vpop.permute.xlu0 %64
    %vm66 = vcmp.lt.s32.totalorder %v56, 32
    %v67 = vsel %vm66, %v63, %v65
    %v68 = vsel %vm66, %v65, %v63
    %v69 = vadd.f32 %v60, %v68
    %v70 = vadd.f32 %v61, %v67
    %71 = vrot.lane.b32.xlu0 %v69, 64
    %v72 = vpop.permute.xlu0 %71
    %73 = vrot.lane.b32.xlu0 %v70, 64
    %v74 = vpop.permute.xlu0 %73
    %vm75 = vcmp.lt.s32.totalorder %v56, 64
    %v76 = vsel %vm75, %v72, %v74
    %v77 = vsel %vm75, %v74, %v72
    %v78 = vadd.f32 %v69, %v77
    %v79 = vadd.f32 %v70, %v76
    %v80 = vadd.f32 %v78, %v79
    %v81 = vmul.f32 %v80, 0.0625
    %v82 = vsub.f32 %v49, %v81
    %v83 = vsub.f32 %v50, %v81
    %v84 = vmul.f32 %v82, %v82
    %v85 = vmul.f32 %v83, %v83
    %86 = vrot.lane.b32.xlu0 %v84, 16
    %v87 = vpop.permute.xlu0 %86
    %88 = vrot.lane.b32.xlu0 %v85, 16
    %v89 = vpop.permute.xlu0 %88
    %v90 = vsel %vm57, %v87, %v89
    %v91 = vsel %vm57, %v89, %v87
    %v92 = vadd.f32 %v84, %v91
    %v93 = vadd.f32 %v85, %v90
    %94 = vrot.lane.b32.xlu0 %v92, 32
    %v95 = vpop.permute.xlu0 %94
    %96 = vrot.lane.b32.xlu0 %v93, 32
    %v97 = vpop.permute.xlu0 %96
    %v98 = vsel %vm66, %v95, %v97
    %v99 = vsel %vm66, %v97, %v95
    %v100 = vadd.f32 %v92, %v99
    %v101 = vadd.f32 %v93, %v98
    %102 = vrot.lane.b32.xlu0 %v100, 64
    %v103 = vpop.permute.xlu0 %102
    %104 = vrot.lane.b32.xlu0 %v101, 64
    %v105 = vpop.permute.xlu0 %104
    %v106 = vsel %vm75, %v103, %v105
    %v107 = vsel %vm75, %v105, %v103
    %v108 = vadd.f32 %v100, %v107
    %v109 = vadd.f32 %v101, %v106
    %v110 = vadd.f32 %v108, %v109
    %v111 = vmul.f32 %v110, 0.0625
    %v112 = vadd.f32 %v111, 1e-05
    %v113 = vrsqrt.pop %v112
    %v114 = vmul.f32 %v82, %v113
    %v115 = vmul.f32 %v83, %v113
    %v116 = vld [vmem:[%s1] sm:$0x3]
    %v118 = vlaneseq
    %v119 = vshrl.u32 %v118, 7
    %v120 = vsub.s32 0, %v119
    %v121 = vrot.slane %v116, %v120
    %v122 = vlaneseq
    %v123 = vshrl.u32 %v122, 7
    %v124 = vsub.s32 1, %v123
    %v125 = vrot.slane %v116, %v124
    %v128 = vmul.f32 %v114, %v121
    %v129 = vmul.f32 %v115, %v125
    %v130 = vld [vmem:[%s2] sm:$0x3]
    %v132 = vlaneseq
    %v133 = vshrl.u32 %v132, 7
    %v134 = vsub.s32 0, %v133
    %v135 = vrot.slane %v130, %v134
    %v136 = vlaneseq
    %v137 = vshrl.u32 %v136, 7
    %v138 = vsub.s32 1, %v137
    %v139 = vrot.slane %v130, %v138
    %v142 = vadd.f32 %v128, %v135
    %v143 = vadd.f32 %v129, %v139
    %v144 = vmul.f32 %v142, 0.5
    %v145 = vmul.f32 %v143, 0.5
    %v146 = vmul.f32 %v142, 0.70710677
    %v147 = vmul.f32 %v143, 0.70710677
    %vm148 = vcmp.ge.f32.partialorder %v146, 0.0
    %vm149 = vcmp.ge.f32.partialorder %v147, 0.0
    %v150 = vsel %vm148, 1.0, -1.0
    %v151 = vsel %vm149, 1.0, -1.0
    %v152 = vand.u32 2147483647, %v146
    %v153 = vand.u32 2147483647, %v147
    %v154 = vmul.f32 %v152, 0.3275911
    %v155 = vmul.f32 %v153, 0.3275911
    %v156 = vadd.f32 %v154, 1.0
    %v157 = vadd.f32 %v155, 1.0
    %v158 = vrcp.pop %v156
    %v159 = vrcp.pop %v157
    %v160 = vmul.f32 %v158, 1.0614054
    %v161 = vmul.f32 %v159, 1.0614054
    %v162 = vadd.f32 %v160, -1.4531521
    %v163 = vadd.f32 %v161, -1.4531521
    %v164 = vmul.f32 %v162, %v158
    %v165 = vmul.f32 %v163, %v159
    %v166 = vadd.f32 %v164, 1.4214138
    %v167 = vadd.f32 %v165, 1.4214138
    %v168 = vmul.f32 %v166, %v158
    %v169 = vmul.f32 %v167, %v159
    %v170 = vadd.f32 %v168, -0.28449672
    %v171 = vadd.f32 %v169, -0.28449672
    %v172 = vmul.f32 %v170, %v158
    %v173 = vmul.f32 %v171, %v159
    %v174 = vadd.f32 %v172, 0.2548296
    %v175 = vadd.f32 %v173, 0.2548296
    %v176 = vmul.f32 %v174, %v158
    %v177 = vmul.f32 %v175, %v159
    %v178 = vsub.f32 0.0, %v152
    %v179 = vsub.f32 0.0, %v153
    %v180 = vmul.f32 %v178, %v152
    %v181 = vmul.f32 %v179, %v153
    %v182 = vmul.f32 %v180, 1.442695
    %v183 = vpow.pop %v182
    %v184 = vmul.f32 %v181, 1.442695
    %v185 = vpow.pop %v184
    %v186 = vmul.f32 %v176, %v183
    %v187 = vmul.f32 %v177, %v185
    %v188 = vsub.f32 1.0, %v186
    %v189 = vsub.f32 1.0, %v187
    %v190 = vmul.f32 %v150, %v188
    %v191 = vmul.f32 %v151, %v189
    %v192 = vadd.f32 %v190, 1.0
    %v193 = vadd.f32 %v191, 1.0
    %v194 = vmul.f32 %v144, %v192
    %v195 = vmul.f32 %v145, %v193
    %196 = vrot.lane.b32.xlu0 %v194, 17
    %v197 = vpop.permute.xlu0 %196
    %198 = vrot.lane.b32.xlu0 %v195, 17
    %v199 = vpop.permute.xlu0 %198
    %vm200 = vcmp.lt.s32.totalorder %v56, 17
    %v201 = vsel %vm200, %v197, %v199
    %v202 = vsel %vm200, %v199, %v197
    %v203 = vld [vmem:[%s9] sm:$0x3]
    %v205 = vlaneseq
    %v206 = vshrl.u32 %v205, 7
    %v207 = vsub.s32 0, %v206
    %v208 = vrot.slane %v203, %v207
    %v209 = vlaneseq
    %v210 = vshrl.u32 %v209, 7
    %v211 = vsub.s32 1, %v210
    %v212 = vrot.slane %v203, %v211
    %v215 = vmul.f32 %v202, %v208
    %v216 = vmul.f32 %v201, %v212
    %217 = vrot.lane.b32.xlu0 %v194, 16
    %v218 = vpop.permute.xlu0 %217
    %219 = vrot.lane.b32.xlu0 %v195, 16
    %v220 = vpop.permute.xlu0 %219
    %v221 = vsel %vm57, %v218, %v220
    %v222 = vsel %vm57, %v220, %v218
    %s223 = scalar_lea.vmem %s9, 2
    %v224 = vld [vmem:[%s223] sm:$0x3]
    %v226 = vlaneseq
    %v227 = vshrl.u32 %v226, 7
    %v228 = vsub.s32 0, %v227
    %v229 = vrot.slane %v224, %v228
    %v230 = vlaneseq
    %v231 = vshrl.u32 %v230, 7
    %v232 = vsub.s32 1, %v231
    %v233 = vrot.slane %v224, %v232
    %v236 = vmul.f32 %v222, %v229
    %v237 = vmul.f32 %v221, %v233
    %238 = vrot.lane.b32.xlu0 %v194, 15
    %v239 = vpop.permute.xlu0 %238
    %240 = vrot.lane.b32.xlu0 %v195, 15
    %v241 = vpop.permute.xlu0 %240
    %vm242 = vcmp.lt.s32.totalorder %v56, 15
    %v243 = vsel %vm242, %v239, %v241
    %v244 = vsel %vm242, %v241, %v239
    %s245 = scalar_lea.vmem %s9, 4
    %v246 = vld [vmem:[%s245] sm:$0x3]
    %v248 = vlaneseq
    %v249 = vshrl.u32 %v248, 7
    %v250 = vsub.s32 0, %v249
    %v251 = vrot.slane %v246, %v250
    %v252 = vlaneseq
    %v253 = vshrl.u32 %v252, 7
    %v254 = vsub.s32 1, %v253
    %v255 = vrot.slane %v246, %v254
    %v258 = vmul.f32 %v244, %v251
    %v259 = vmul.f32 %v243, %v255
    %260 = vrot.lane.b32.xlu0 %v194, 1
    %v261 = vpop.permute.xlu0 %260
    %262 = vrot.lane.b32.xlu0 %v195, 1
    %v263 = vpop.permute.xlu0 %262
    %vm264 = vcmp.lt.s32.totalorder %v56, 1
    %v265 = vsel %vm264, %v261, %v263
    %v266 = vsel %vm264, %v263, %v261
    %s267 = scalar_lea.vmem %s9, 6
    %v268 = vld [vmem:[%s267] sm:$0x3]
    %v270 = vlaneseq
    %v271 = vshrl.u32 %v270, 7
    %v272 = vsub.s32 0, %v271
    %v273 = vrot.slane %v268, %v272
    %v274 = vlaneseq
    %v275 = vshrl.u32 %v274, 7
    %v276 = vsub.s32 1, %v275
    %v277 = vrot.slane %v268, %v276
    %v280 = vmul.f32 %v266, %v273
    %v281 = vmul.f32 %v265, %v277
    %282 = vrot.lane.b32.xlu0 %v194, 127
    %v283 = vpop.permute.xlu0 %282
    %284 = vrot.lane.b32.xlu0 %v195, 127
    %v285 = vpop.permute.xlu0 %284
    %vm286 = vcmp.lt.s32.totalorder %v56, 127
    %v287 = vsel %vm286, %v283, %v285
    %v288 = vsel %vm286, %v285, %v283
    %s289 = scalar_lea.vmem %s9, 10
    %v290 = vld [vmem:[%s289] sm:$0x3]
    %v292 = vlaneseq
    %v293 = vshrl.u32 %v292, 7
    %v294 = vsub.s32 0, %v293
    %v295 = vrot.slane %v290, %v294
    %v296 = vlaneseq
    %v297 = vshrl.u32 %v296, 7
    %v298 = vsub.s32 1, %v297
    %v299 = vrot.slane %v290, %v298
    %v302 = vmul.f32 %v287, %v295
    %v303 = vmul.f32 %v288, %v299
    %304 = vrot.lane.b32.xlu0 %v194, 113
    %v305 = vpop.permute.xlu0 %304
    %306 = vrot.lane.b32.xlu0 %v195, 113
    %v307 = vpop.permute.xlu0 %306
    %vm308 = vcmp.lt.s32.totalorder %v56, 113
    %v309 = vsel %vm308, %v305, %v307
    %v310 = vsel %vm308, %v307, %v305
    %s311 = scalar_lea.vmem %s9, 12
    %v312 = vld [vmem:[%s311] sm:$0x3]
    %v314 = vlaneseq
    %v315 = vshrl.u32 %v314, 7
    %v316 = vsub.s32 0, %v315
    %v317 = vrot.slane %v312, %v316
    %v318 = vlaneseq
    %v319 = vshrl.u32 %v318, 7
    %v320 = vsub.s32 1, %v319
    %v321 = vrot.slane %v312, %v320
    %v324 = vmul.f32 %v309, %v317
    %v325 = vmul.f32 %v310, %v321
    %326 = vrot.lane.b32.xlu0 %v194, 112
    %v327 = vpop.permute.xlu0 %326
    %328 = vrot.lane.b32.xlu0 %v195, 112
    %v329 = vpop.permute.xlu0 %328
    %vm330 = vcmp.lt.s32.totalorder %v56, 112
    %v331 = vsel %vm330, %v327, %v329
    %v332 = vsel %vm330, %v329, %v327
    %s333 = scalar_lea.vmem %s9, 14
    %v334 = vld [vmem:[%s333] sm:$0x3]
    %v336 = vlaneseq
    %v337 = vshrl.u32 %v336, 7
    %v338 = vsub.s32 0, %v337
    %v339 = vrot.slane %v334, %v338
    %v340 = vlaneseq
    %v341 = vshrl.u32 %v340, 7
    %v342 = vsub.s32 1, %v341
    %v343 = vrot.slane %v334, %v342
    %v346 = vmul.f32 %v331, %v339
    %v347 = vmul.f32 %v332, %v343
    %348 = vrot.lane.b32.xlu0 %v194, 111
    %v349 = vpop.permute.xlu0 %348
    %350 = vrot.lane.b32.xlu0 %v195, 111
    %v351 = vpop.permute.xlu0 %350
    %vm352 = vcmp.lt.s32.totalorder %v56, 111
    %v353 = vsel %vm352, %v349, %v351
    %v354 = vsel %vm352, %v351, %v349
    %s355 = scalar_lea.vmem %s9, 16
    %v356 = vld [vmem:[%s355] sm:$0x3]
    %v358 = vlaneseq
    %v359 = vshrl.u32 %v358, 7
    %v360 = vsub.s32 0, %v359
    %v361 = vrot.slane %v356, %v360
    %v362 = vlaneseq
    %v363 = vshrl.u32 %v362, 7
    %v364 = vsub.s32 1, %v363
    %v365 = vrot.slane %v356, %v364
    %v368 = vmul.f32 %v353, %v361
    %v369 = vmul.f32 %v354, %v365
    %v370 = vld [vmem:[%s5] sm:$0x3]
    %v371 = vld [vmem:[%s6] sm:$0xf]
    %v374 = vrot.slane %v236, 4
    %v375 = vrot.slane %v237, 4
    %v380 = vrot.slane %v280, 4
    %v381 = vrot.slane %v281, 4
    %v386 = vrot.slane %v302, 4
    %v387 = vrot.slane %v303, 4
    %v392 = vrot.slane %v346, 4
    %v393 = vrot.slane %v347, 4
    %vm396 = vcmask 1043456
    %v397 = vsel %vm396, %v215, %v374
    %v398 = vsel %vm396, %v216, %v375
    %v399 = vsel %vm396, %v258, %v380
    %v400 = vsel %vm396, %v259, %v381
    %v401 = vsel %vm396, %v194, %v386
    %v402 = vsel %vm396, %v195, %v387
    %v403 = vsel %vm396, %v324, %v392
    %v404 = vsel %vm396, %v325, %v393
    %v405 = vpack.c.bf16 %v399, %v397
    %v406 = vpack.c.bf16 %v400, %v398
    %v407 = vpack.c.bf16 %v403, %v401
    %v408 = vpack.c.bf16 %v404, %v402
    %v409 = vpack.c.bf16 %v368, %v368
    %v410 = vpack.c.bf16 %v369, %v369
    %412 = vset.pattern.permute.xlu0 0
    %413 = vperm.xlu0 %412, %v371
    %v414 = vpop.permute.xlu0 %413
    %vm416 = vcmask 293888
    %v418 = vsel %vm416, %v370, 0
    %vm420 = vcmask 1041408
    %v422 = vsel %vm420, %v409, 0
    %v425 = vsel %vm420, %v410, 0
    %427 = vmatprep.subr.bf16.mxu0 %v406
    %428 = vmatpush1.bf16.msra.mxu0 %v405
    %429 = vmatprep.subr.bf16.mxu0 %v408
    %430 = vmatpush1.bf16.msra.mxu0 %v407
    %431 = vmatprep.subr.bf16.mxu0 %v425
    %432 = vmatpush1.bf16.msra.mxu0 %v422
    %433 = vmatprep.subr.bf16.mxu0 0
    %434 = vmatpush1.bf16.msra.mxu0 0
    %435 = vmatprep.subr.bf16.mxu0 0
    %436 = vmatpush1.bf16.msra.mxu0 0
    %437 = vmatprep.subr.bf16.mxu0 0
    %438 = vmatpush1.bf16.msra.mxu0 0
    %439 = vmatprep.subr.bf16.mxu0 0
    %440 = vmatpush1.bf16.msra.mxu0 0
    %441 = vmatprep.subr.bf16.mxu0 0
    %442 = vmatpush1.bf16.msra.mxu0 0
    %443 = vmatprep.subr.bf16.mxu0 0
    %444 = vmatpush1.bf16.msra.mxu0 0
    %445 = vmatprep.subr.bf16.mxu0 0
    %446 = vmatpush1.bf16.msra.mxu0 0
    %447 = vmatprep.subr.bf16.mxu0 0
    %448 = vmatpush1.bf16.msra.mxu0 0
    %449 = vmatprep.subr.bf16.mxu0 0
    %450 = vmatpush1.bf16.msra.mxu0 0
    %451 = vmatprep.subr.bf16.mxu0 0
    %452 = vmatpush1.bf16.msra.mxu0 0
    %453 = vmatprep.subr.bf16.mxu0 0
    %454 = vmatpush1.bf16.msra.mxu0 0
    %455 = vmatprep.subr.bf16.mxu0 0
    %456 = vmatpush1.bf16.msra.mxu0 0
    %457 = vmatprep.subr.bf16.mxu0 0
    %458 = vmatpush1.bf16.msra.mxu0 0
    %459 = vmatprep.mubr.bf16.mxu0 0
    %460 = vmatmul.mubr.bf16.gmra.mrb[0].mxu0 %v418
    %v461 = vpop.f32.mrb[0].mxu0
    %v462 = vadd.f32 %v414, %v461
    %v463 = vpop.f32.mrb[0].mxu0
    %v464 = vadd.f32 %v414, %v463
    %v465 = vpop.f32.mrb[0].mxu0
    %v466 = vpop.f32.mrb[0].mxu0
    %467 = vdwg.mxu0
    %v470 = vrot.slane %v215, 4
    %v471 = vrot.slane %v216, 4
    %v476 = vrot.slane %v258, 4
    %v477 = vrot.slane %v259, 4
    %v482 = vrot.slane %v194, 4
    %v483 = vrot.slane %v195, 4
    %v488 = vrot.slane %v324, 4
    %v489 = vrot.slane %v325, 4
    %v494 = vrot.slane %v368, 4
    %v495 = vrot.slane %v369, 4
    %v498 = vsel %vm396, %v470, %v236
    %v499 = vsel %vm396, %v471, %v237
    %v500 = vsel %vm396, %v476, %v280
    %v501 = vsel %vm396, %v477, %v281
    %v502 = vsel %vm396, %v482, %v302
    %v503 = vsel %vm396, %v483, %v303
    %v504 = vsel %vm396, %v488, %v346
    %v505 = vsel %vm396, %v489, %v347
    %v506 = vpack.c.bf16 %v500, %v498
    %v507 = vpack.c.bf16 %v501, %v499
    %v508 = vpack.c.bf16 %v504, %v502
    %v509 = vpack.c.bf16 %v505, %v503
    %v510 = vpack.c.bf16 %v494, %v494
    %v511 = vpack.c.bf16 %v495, %v495
    %v513 = vsel %vm420, %v510, 0
    %v516 = vsel %vm420, %v511, 0
    %518 = vmatprep.subr.bf16.mxu0 %v507
    %519 = vmatpush1.bf16.msra.mxu0 %v506
    %520 = vmatprep.subr.bf16.mxu0 %v509
    %521 = vmatpush1.bf16.msra.mxu0 %v508
    %522 = vmatprep.subr.bf16.mxu0 %v516
    %523 = vmatpush1.bf16.msra.mxu0 %v513
    %524 = vmatprep.subr.bf16.mxu0 0
    %525 = vmatpush1.bf16.msra.mxu0 0
    %526 = vmatprep.subr.bf16.mxu0 0
    %527 = vmatpush1.bf16.msra.mxu0 0
    %528 = vmatprep.subr.bf16.mxu0 0
    %529 = vmatpush1.bf16.msra.mxu0 0
    %530 = vmatprep.subr.bf16.mxu0 0
    %531 = vmatpush1.bf16.msra.mxu0 0
    %532 = vmatprep.subr.bf16.mxu0 0
    %533 = vmatpush1.bf16.msra.mxu0 0
    %534 = vmatprep.subr.bf16.mxu0 0
    %535 = vmatpush1.bf16.msra.mxu0 0
    %536 = vmatprep.subr.bf16.mxu0 0
    %537 = vmatpush1.bf16.msra.mxu0 0
    %538 = vmatprep.subr.bf16.mxu0 0
    %539 = vmatpush1.bf16.msra.mxu0 0
    %540 = vmatprep.subr.bf16.mxu0 0
    %541 = vmatpush1.bf16.msra.mxu0 0
    %542 = vmatprep.subr.bf16.mxu0 0
    %543 = vmatpush1.bf16.msra.mxu0 0
    %544 = vmatprep.subr.bf16.mxu0 0
    %545 = vmatpush1.bf16.msra.mxu0 0
    %546 = vmatprep.subr.bf16.mxu0 0
    %547 = vmatpush1.bf16.msra.mxu0 0
    %548 = vmatprep.subr.bf16.mxu0 0
    %549 = vmatpush1.bf16.msra.mxu0 0
    %550 = vmatprep.mubr.bf16.mxu0 0
    %551 = vmatmul.mubr.bf16.gmra.mrb[0].mxu0 %v418
    %v552 = vpop.f32.mrb[0].mxu0
    %v553 = vadd.f32 %v414, %v552
    %v554 = vpop.f32.mrb[0].mxu0
    %v555 = vadd.f32 %v414, %v554
    %v556 = vpop.f32.mrb[0].mxu0
    %v557 = vpop.f32.mrb[0].mxu0
    %558 = vdwg.mxu0
    %v561 = vrot.slane %v553, 4
    %v562 = vrot.slane %v555, 4
    %v565 = vsel %vm396, %v462, %v561
    %v566 = vsel %vm396, %v464, %v562
    %567 = vrot.lane.b32.xlu0 %v565, 16
    %v568 = vpop.permute.xlu0 %567
    %569 = vrot.lane.b32.xlu0 %v566, 16
    %v570 = vpop.permute.xlu0 %569
    %v571 = vsel %vm57, %v568, %v570
    %v572 = vsel %vm57, %v570, %v568
    %v573 = vadd.f32 %v565, %v572
    %v574 = vadd.f32 %v566, %v571
    %575 = vrot.lane.b32.xlu0 %v573, 32
    %v576 = vpop.permute.xlu0 %575
    %577 = vrot.lane.b32.xlu0 %v574, 32
    %v578 = vpop.permute.xlu0 %577
    %v579 = vsel %vm66, %v576, %v578
    %v580 = vsel %vm66, %v578, %v576
    %v581 = vadd.f32 %v573, %v580
    %v582 = vadd.f32 %v574, %v579
    %583 = vrot.lane.b32.xlu0 %v581, 64
    %v584 = vpop.permute.xlu0 %583
    %585 = vrot.lane.b32.xlu0 %v582, 64
    %v586 = vpop.permute.xlu0 %585
    %v587 = vsel %vm75, %v584, %v586
    %v588 = vsel %vm75, %v586, %v584
    %v589 = vadd.f32 %v581, %v588
    %v590 = vadd.f32 %v582, %v587
    %v591 = vadd.f32 %v589, %v590
    %v592 = vmul.f32 %v591, 0.0625
    %v593 = vsub.f32 %v565, %v592
    %v594 = vsub.f32 %v566, %v592
    %v595 = vmul.f32 %v593, %v593
    %v596 = vmul.f32 %v594, %v594
    %597 = vrot.lane.b32.xlu0 %v595, 16
    %v598 = vpop.permute.xlu0 %597
    %599 = vrot.lane.b32.xlu0 %v596, 16
    %v600 = vpop.permute.xlu0 %599
    %v601 = vsel %vm57, %v598, %v600
    %v602 = vsel %vm57, %v600, %v598
    %v603 = vadd.f32 %v595, %v602
    %v604 = vadd.f32 %v596, %v601
    %605 = vrot.lane.b32.xlu0 %v603, 32
    %v606 = vpop.permute.xlu0 %605
    %607 = vrot.lane.b32.xlu0 %v604, 32
    %v608 = vpop.permute.xlu0 %607
    %v609 = vsel %vm66, %v606, %v608
    %v610 = vsel %vm66, %v608, %v606
    %v611 = vadd.f32 %v603, %v610
    %v612 = vadd.f32 %v604, %v609
    %613 = vrot.lane.b32.xlu0 %v611, 64
    %v614 = vpop.permute.xlu0 %613
    %615 = vrot.lane.b32.xlu0 %v612, 64
    %v616 = vpop.permute.xlu0 %615
    %v617 = vsel %vm75, %v614, %v616
    %v618 = vsel %vm75, %v616, %v614
    %v619 = vadd.f32 %v611, %v618
    %v620 = vadd.f32 %v612, %v617
    %v621 = vadd.f32 %v619, %v620
    %v622 = vmul.f32 %v621, 0.0625
    %v623 = vadd.f32 %v622, 1e-05
    %v624 = vrsqrt.pop %v623
    %v625 = vmul.f32 %v593, %v624
    %v626 = vmul.f32 %v594, %v624
    %v627 = vld [vmem:[%s3] sm:$0x3]
    %v629 = vlaneseq
    %v630 = vshrl.u32 %v629, 7
    %v631 = vsub.s32 0, %v630
    %v632 = vrot.slane %v627, %v631
    %v633 = vlaneseq
    %v634 = vshrl.u32 %v633, 7
    %v635 = vsub.s32 1, %v634
    %v636 = vrot.slane %v627, %v635
    %v639 = vmul.f32 %v625, %v632
    %v640 = vmul.f32 %v626, %v636
    %v641 = vld [vmem:[%s4] sm:$0x3]
    %v643 = vlaneseq
    %v644 = vshrl.u32 %v643, 7
    %v645 = vsub.s32 0, %v644
    %v646 = vrot.slane %v641, %v645
    %v647 = vlaneseq
    %v648 = vshrl.u32 %v647, 7
    %v649 = vsub.s32 1, %v648
    %v650 = vrot.slane %v641, %v649
    %v653 = vadd.f32 %v639, %v646
    %v654 = vadd.f32 %v640, %v650
    %v655 = vmul.f32 %v653, 0.5
    %v656 = vmul.f32 %v654, 0.5
    %v657 = vmul.f32 %v653, 0.70710677
    %v658 = vmul.f32 %v654, 0.70710677
    %vm659 = vcmp.ge.f32.partialorder %v657, 0.0
    %vm660 = vcmp.ge.f32.partialorder %v658, 0.0
    %v661 = vsel %vm659, 1.0, -1.0
    %v662 = vsel %vm660, 1.0, -1.0
    %v663 = vand.u32 2147483647, %v657
    %v664 = vand.u32 2147483647, %v658
    %v665 = vmul.f32 %v663, 0.3275911
    %v666 = vmul.f32 %v664, 0.3275911
    %v667 = vadd.f32 %v665, 1.0
    %v668 = vadd.f32 %v666, 1.0
    %v669 = vrcp.pop %v667
    %v670 = vrcp.pop %v668
    %v671 = vmul.f32 %v669, 1.0614054
    %v672 = vmul.f32 %v670, 1.0614054
    %v673 = vadd.f32 %v671, -1.4531521
    %v674 = vadd.f32 %v672, -1.4531521
    %v675 = vmul.f32 %v673, %v669
    %v676 = vmul.f32 %v674, %v670
    %v677 = vadd.f32 %v675, 1.4214138
    %v678 = vadd.f32 %v676, 1.4214138
    %v679 = vmul.f32 %v677, %v669
    %v680 = vmul.f32 %v678, %v670
    %v681 = vadd.f32 %v679, -0.28449672
    %v682 = vadd.f32 %v680, -0.28449672
    %v683 = vmul.f32 %v681, %v669
    %v684 = vmul.f32 %v682, %v670
    %v685 = vadd.f32 %v683, 0.2548296
    %v686 = vadd.f32 %v684, 0.2548296
    %v687 = vmul.f32 %v685, %v669
    %v688 = vmul.f32 %v686, %v670
    %v689 = vsub.f32 0.0, %v663
    %v690 = vsub.f32 0.0, %v664
    %v691 = vmul.f32 %v689, %v663
    %v692 = vmul.f32 %v690, %v664
    %v693 = vmul.f32 %v691, 1.442695
    %v694 = vpow.pop %v693
    %v695 = vmul.f32 %v692, 1.442695
    %v696 = vpow.pop %v695
    %v697 = vmul.f32 %v687, %v694
    %v698 = vmul.f32 %v688, %v696
    %v699 = vsub.f32 1.0, %v697
    %v700 = vsub.f32 1.0, %v698
    %v701 = vmul.f32 %v661, %v699
    %v702 = vmul.f32 %v662, %v700
    %v703 = vadd.f32 %v701, 1.0
    %v704 = vadd.f32 %v702, 1.0
    %v705 = vmul.f32 %v655, %v703
    %v706 = vmul.f32 %v656, %v704
    %707 = vrot.lane.b32.xlu0 %v705, 17
    %v708 = vpop.permute.xlu0 %707
    %709 = vrot.lane.b32.xlu0 %v706, 17
    %v710 = vpop.permute.xlu0 %709
    %v711 = vsel %vm200, %v708, %v710
    %v712 = vsel %vm200, %v710, %v708
    %v713 = vmul.f32 %v712, %v208
    %v714 = vmul.f32 %v711, %v212
    %715 = vrot.lane.b32.xlu0 %v705, 16
    %v716 = vpop.permute.xlu0 %715
    %717 = vrot.lane.b32.xlu0 %v706, 16
    %v718 = vpop.permute.xlu0 %717
    %v719 = vsel %vm57, %v716, %v718
    %v720 = vsel %vm57, %v718, %v716
    %v721 = vmul.f32 %v720, %v229
    %v722 = vmul.f32 %v719, %v233
    %723 = vrot.lane.b32.xlu0 %v705, 15
    %v724 = vpop.permute.xlu0 %723
    %725 = vrot.lane.b32.xlu0 %v706, 15
    %v726 = vpop.permute.xlu0 %725
    %v727 = vsel %vm242, %v724, %v726
    %v728 = vsel %vm242, %v726, %v724
    %v729 = vmul.f32 %v728, %v251
    %v730 = vmul.f32 %v727, %v255
    %731 = vrot.lane.b32.xlu0 %v705, 1
    %v732 = vpop.permute.xlu0 %731
    %733 = vrot.lane.b32.xlu0 %v706, 1
    %v734 = vpop.permute.xlu0 %733
    %v735 = vsel %vm264, %v732, %v734
    %v736 = vsel %vm264, %v734, %v732
    %v737 = vmul.f32 %v736, %v273
    %v738 = vmul.f32 %v735, %v277
    %739 = vrot.lane.b32.xlu0 %v705, 127
    %v740 = vpop.permute.xlu0 %739
    %741 = vrot.lane.b32.xlu0 %v706, 127
    %v742 = vpop.permute.xlu0 %741
    %v743 = vsel %vm286, %v740, %v742
    %v744 = vsel %vm286, %v742, %v740
    %v745 = vmul.f32 %v743, %v295
    %v746 = vmul.f32 %v744, %v299
    %747 = vrot.lane.b32.xlu0 %v705, 113
    %v748 = vpop.permute.xlu0 %747
    %749 = vrot.lane.b32.xlu0 %v706, 113
    %v750 = vpop.permute.xlu0 %749
    %v751 = vsel %vm308, %v748, %v750
    %v752 = vsel %vm308, %v750, %v748
    %v753 = vmul.f32 %v751, %v317
    %v754 = vmul.f32 %v752, %v321
    %755 = vrot.lane.b32.xlu0 %v705, 112
    %v756 = vpop.permute.xlu0 %755
    %757 = vrot.lane.b32.xlu0 %v706, 112
    %v758 = vpop.permute.xlu0 %757
    %v759 = vsel %vm330, %v756, %v758
    %v760 = vsel %vm330, %v758, %v756
    %v761 = vmul.f32 %v759, %v339
    %v762 = vmul.f32 %v760, %v343
    %763 = vrot.lane.b32.xlu0 %v705, 111
    %v764 = vpop.permute.xlu0 %763
    %765 = vrot.lane.b32.xlu0 %v706, 111
    %v766 = vpop.permute.xlu0 %765
    %v767 = vsel %vm352, %v764, %v766
    %v768 = vsel %vm352, %v766, %v764
    %v769 = vmul.f32 %v767, %v361
    %v770 = vmul.f32 %v768, %v365
    %v771 = vld [vmem:[%s7] sm:$0x3]
    %v772 = vld [vmem:[%s8] sm:$0xf]
    %v775 = vrot.slane %v721, 4
    %v776 = vrot.slane %v722, 4
    %v781 = vrot.slane %v737, 4
    %v782 = vrot.slane %v738, 4
    %v787 = vrot.slane %v745, 4
    %v788 = vrot.slane %v746, 4
    %v793 = vrot.slane %v761, 4
    %v794 = vrot.slane %v762, 4
    %v797 = vsel %vm396, %v713, %v775
    %v798 = vsel %vm396, %v714, %v776
    %v799 = vsel %vm396, %v729, %v781
    %v800 = vsel %vm396, %v730, %v782
    %v801 = vsel %vm396, %v705, %v787
    %v802 = vsel %vm396, %v706, %v788
    %v803 = vsel %vm396, %v753, %v793
    %v804 = vsel %vm396, %v754, %v794
    %v805 = vpack.c.bf16 %v799, %v797
    %v806 = vpack.c.bf16 %v800, %v798
    %v807 = vpack.c.bf16 %v803, %v801
    %v808 = vpack.c.bf16 %v804, %v802
    %v809 = vpack.c.bf16 %v769, %v769
    %v810 = vpack.c.bf16 %v770, %v770
    %812 = vset.pattern.permute.xlu0 0
    %813 = vperm.xlu0 %812, %v772
    %v814 = vpop.permute.xlu0 %813
    %v817 = vsel %vm416, %v771, 0
    %v820 = vsel %vm420, %v809, 0
    %v823 = vsel %vm420, %v810, 0
    %825 = vmatprep.subr.bf16.mxu0 %v806
    %826 = vmatpush1.bf16.msra.mxu0 %v805
    %827 = vmatprep.subr.bf16.mxu0 %v808
    %828 = vmatpush1.bf16.msra.mxu0 %v807
    %829 = vmatprep.subr.bf16.mxu0 %v823
    %830 = vmatpush1.bf16.msra.mxu0 %v820
    %831 = vmatprep.subr.bf16.mxu0 0
    %832 = vmatpush1.bf16.msra.mxu0 0
    %833 = vmatprep.subr.bf16.mxu0 0
    %834 = vmatpush1.bf16.msra.mxu0 0
    %835 = vmatprep.subr.bf16.mxu0 0
    %836 = vmatpush1.bf16.msra.mxu0 0
    %837 = vmatprep.subr.bf16.mxu0 0
    %838 = vmatpush1.bf16.msra.mxu0 0
    %839 = vmatprep.subr.bf16.mxu0 0
    %840 = vmatpush1.bf16.msra.mxu0 0
    %841 = vmatprep.subr.bf16.mxu0 0
    %842 = vmatpush1.bf16.msra.mxu0 0
    %843 = vmatprep.subr.bf16.mxu0 0
    %844 = vmatpush1.bf16.msra.mxu0 0
    %845 = vmatprep.subr.bf16.mxu0 0
    %846 = vmatpush1.bf16.msra.mxu0 0
    %847 = vmatprep.subr.bf16.mxu0 0
    %848 = vmatpush1.bf16.msra.mxu0 0
    %849 = vmatprep.subr.bf16.mxu0 0
    %850 = vmatpush1.bf16.msra.mxu0 0
    %851 = vmatprep.subr.bf16.mxu0 0
    %852 = vmatpush1.bf16.msra.mxu0 0
    %853 = vmatprep.subr.bf16.mxu0 0
    %854 = vmatpush1.bf16.msra.mxu0 0
    %855 = vmatprep.subr.bf16.mxu0 0
    %856 = vmatpush1.bf16.msra.mxu0 0
    %857 = vmatprep.mubr.bf16.mxu0 0
    %858 = vmatmul.mubr.bf16.gmra.mrb[0].mxu0 %v817
    %v859 = vpop.f32.mrb[0].mxu0
    %v860 = vadd.f32 %v814, %v859
    %v861 = vpop.f32.mrb[0].mxu0
    %v862 = vadd.f32 %v814, %v861
    %v863 = vpop.f32.mrb[0].mxu0
    %v864 = vpop.f32.mrb[0].mxu0
    %865 = vdwg.mxu0
    %v868 = vrot.slane %v713, 4
    %v869 = vrot.slane %v714, 4
    %v874 = vrot.slane %v729, 4
    %v875 = vrot.slane %v730, 4
    %v880 = vrot.slane %v705, 4
    %v881 = vrot.slane %v706, 4
    %v886 = vrot.slane %v753, 4
    %v887 = vrot.slane %v754, 4
    %v892 = vrot.slane %v769, 4
    %v893 = vrot.slane %v770, 4
    %v896 = vsel %vm396, %v868, %v721
    %v897 = vsel %vm396, %v869, %v722
    %v898 = vsel %vm396, %v874, %v737
    %v899 = vsel %vm396, %v875, %v738
    %v900 = vsel %vm396, %v880, %v745
    %v901 = vsel %vm396, %v881, %v746
    %v902 = vsel %vm396, %v886, %v761
    %v903 = vsel %vm396, %v887, %v762
    %v904 = vpack.c.bf16 %v898, %v896
    %v905 = vpack.c.bf16 %v899, %v897
    %v906 = vpack.c.bf16 %v902, %v900
    %v907 = vpack.c.bf16 %v903, %v901
    %v908 = vpack.c.bf16 %v892, %v892
    %v909 = vpack.c.bf16 %v893, %v893
    %v911 = vsel %vm420, %v908, 0
    %v914 = vsel %vm420, %v909, 0
    %916 = vmatprep.subr.bf16.mxu0 %v905
    %917 = vmatpush1.bf16.msra.mxu0 %v904
    %918 = vmatprep.subr.bf16.mxu0 %v907
    %919 = vmatpush1.bf16.msra.mxu0 %v906
    %920 = vmatprep.subr.bf16.mxu0 %v914
    %921 = vmatpush1.bf16.msra.mxu0 %v911
    %922 = vmatprep.subr.bf16.mxu0 0
    %923 = vmatpush1.bf16.msra.mxu0 0
    %924 = vmatprep.subr.bf16.mxu0 0
    %925 = vmatpush1.bf16.msra.mxu0 0
    %926 = vmatprep.subr.bf16.mxu0 0
    %927 = vmatpush1.bf16.msra.mxu0 0
    %928 = vmatprep.subr.bf16.mxu0 0
    %929 = vmatpush1.bf16.msra.mxu0 0
    %930 = vmatprep.subr.bf16.mxu0 0
    %931 = vmatpush1.bf16.msra.mxu0 0
    %932 = vmatprep.subr.bf16.mxu0 0
    %933 = vmatpush1.bf16.msra.mxu0 0
    %934 = vmatprep.subr.bf16.mxu0 0
    %935 = vmatpush1.bf16.msra.mxu0 0
    %936 = vmatprep.subr.bf16.mxu0 0
    %937 = vmatpush1.bf16.msra.mxu0 0
    %938 = vmatprep.subr.bf16.mxu0 0
    %939 = vmatpush1.bf16.msra.mxu0 0
    %940 = vmatprep.subr.bf16.mxu0 0
    %941 = vmatpush1.bf16.msra.mxu0 0
    %942 = vmatprep.subr.bf16.mxu0 0
    %943 = vmatpush1.bf16.msra.mxu0 0
    %944 = vmatprep.subr.bf16.mxu0 0
    %945 = vmatpush1.bf16.msra.mxu0 0
    %946 = vmatprep.subr.bf16.mxu0 0
    %947 = vmatpush1.bf16.msra.mxu0 0
    %948 = vmatprep.mubr.bf16.mxu0 0
    %949 = vmatmul.mubr.bf16.gmra.mrb[0].mxu0 %v817
    %v950 = vpop.f32.mrb[0].mxu0
    %v951 = vadd.f32 %v814, %v950
    %v952 = vpop.f32.mrb[0].mxu0
    %v953 = vadd.f32 %v814, %v952
    %v954 = vpop.f32.mrb[0].mxu0
    %v955 = vpop.f32.mrb[0].mxu0
    %956 = vdwg.mxu0
    %v959 = vrot.slane %v951, 4
    %v960 = vrot.slane %v953, 4
    %v963 = vsel %vm396, %v860, %v959
    %v964 = vsel %vm396, %v862, %v960
    %v965 = vadd.f32 %v963, %v49
    %v966 = vadd.f32 %v964, %v50
    %967 = vst [vmem:[#allocation5] sm:$0xff] %v965
    %968 = vst [vmem:[#allocation5 + $0x8] sm:$0xff] %v966
    // Predicated region
    $region46: #{tpu_custom_call.1} parent=1 // pred_check
      _
    $region47: #{tpu_custom_call.1} parent=1 // pred_check_branch
      %970 = sbr.rel (0) target = $region49
    $region48: #{tpu_custom_call.1} parent=1 // pred_region
      %s972 = ssub.s32 256, 256
      %973 = vsyncadd [#allocation4], %s972
      %s975 = sshll.u32 [#allocation5], 4
      %s976 = int_to_ptr.vmem [resolvable:$true] %s975
      %978 = dma.vmem_to_hbm [thread:$0]  %s976, 256, %s10, [#allocation4]
    $region49: #{tpu_custom_call.1} parent=1 // pred_fallthru
      _
    // Predicated region
    $region50: #{tpu_custom_call.1} parent=1 // pred_check
      _
    $region51: #{tpu_custom_call.1} parent=1 // pred_check_branch
      %980 = sbr.rel (0) target = $region53
    $region52: #{tpu_custom_call.1} parent=1 // pred_region
      %981 = dma.done [#allocation4], 256
    $region53: #{tpu_custom_call.1} parent=1 // pred_fallthru
      _
    %982 = vsyncpa [#allocation3], 1
    %983 = vsyncpa [#allocation4], 1

</llo_original>
